<compile_context>
chip_gen: v7x
topology: tpu7x:2x2x1
jax: 0.10.0
libtpu: 0.0.40
codegen_flags: <defaults>
</compile_context>

<pallas_src>
import functools

import jax
import jax.numpy as jnp
from jax import lax
from jax.experimental import pallas as pl
from jax.experimental.pallas import tpu as pltpu

FEAT_DIM = 8          # module feature_dim (rgb half -> 4 input channels)
C_HIDDEN = 512        # module c_hidden
C_MID = 128
OUT_DIM = 3
MAX_TILE_T = 1024     # temporal tile, multiple of 128 (~10 MiB live VMEM)


def _round128(v):
    return ((v + 127) // 128) * 128


def _choose_tile(t, n_batch, max_tile=MAX_TILE_T):
    """Pick (tile_t, n_tiles); tile_t is a multiple of 128."""
    t_up = _round128(t)
    if t_up <= max_tile:
        tile_t, n_tiles = t_up, 1
    else:
        tile_t, n_tiles = max_tile, -(-t // max_tile)
    # v7x has 2 TensorCores: make sure the (parallel) grid has >= 2 programs
    # even for single-sample inference, as long as T allows it.
    if n_batch * n_tiles < 2 and t_up > 128:
        tile_t = _round128(-(-t // 2))
        n_tiles = -(-t // tile_t)
    return tile_t, n_tiles


def x1d_kernel(x_ref, w1_ref, b1_ref, w2c_ref, b2_ref, w3t_ref, b3_ref,
               feat_ref, x4_ref, *, true_t):
    tile_t = feat_ref.shape[2]                 # output rows of this tile
    t_idx = pl.program_id(1)

    # ---- conv1 (k=3): single fused matmul over the tap-concatenated input.
    xcat = x_ref[0, 0]                                        # (tile_t+2, 3*Cin) bf16
    h1 = jnp.dot(xcat, w1_ref[...], preferred_element_type=jnp.float32)
    h1 = jnp.maximum(h1 + b1_ref[...], 0.0)                   # (tile_t+2, 512) f32
    h1b = h1.astype(jnp.bfloat16)

    # conv2 consumes h1 with zero padding at the true sequence boundaries;
    # zero the slab rows whose global h1 index falls outside [0, true_t).
    # (Applied to the bf16 slab; VPU cost is hidden under the conv2 matmul.)
    row = lax.broadcasted_iota(jnp.int32, (tile_t + 2, 1), 0)
    g = row + (t_idx * tile_t - 1)             # global h1 row of each slab row
    h1b = jnp.where(jnp.logical_and(g >= 0, g < true_t), h1b, 0.0)

    # ---- conv2 (k=3): ONE merged matmul against the (512, 384) tap-concat
    # weight; tap alignment = 128-lane-aligned column groups at sublane
    # offsets 0/1/2 of the result.
    y = jnp.dot(h1b, w2c_ref[...], preferred_element_type=jnp.float32)
    h2 = (y[0:tile_t, 0:C_MID]
          + y[1:tile_t + 1, C_MID:2 * C_MID]
          + y[2:tile_t + 2, 2 * C_MID:3 * C_MID]
          + b2_ref[...])
    h2 = jnp.maximum(h2, 0.0)                                 # (tile_t, 128) f32

    # ---- emit xc_feat lane-dense / channel-first via an in-kernel transpose.
    h2t = jnp.transpose(h2, (1, 0))                           # (128, tile_t) f32
    feat_ref[0] = h2t

    # ---- conv3 (k=1) on the transposed activations -> lane-dense (3, tile_t).
    logits = jnp.dot(w3t_ref[...], h2t.astype(jnp.bfloat16),
                     preferred_element_type=jnp.float32)
    x4_ref[0] = jax.nn.sigmoid(0.01 * (logits + b3_ref[...]))


def x_1d_forward(x_ncl, params, *, rgb=True, feat_dim=FEAT_DIM):
    """Pallas version of x_1d.forward. x_ncl: (N, feat_dim, T) in NCL layout."""
    half = feat_dim // 2
    x_ncl = x_ncl[:, :half, :] if rgb else x_ncl[:, half:, :]
    n, cin, t = x_ncl.shape

    tile_t, n_tiles = _choose_tile(t, n)
    t_pad = tile_t * n_tiles

    # Channel-last + bf16 cast + temporal zero pad: 2-row conv halo in front,
    # conv halo plus tile round-up behind (extra rows only feed output rows
    # that are sliced off below).
    x_ntc = jnp.transpose(x_ncl, (0, 2, 1)).astype(jnp.bfloat16)
    x_padded = jnp.pad(x_ntc, ((0, 0), (2, 2 + t_pad - t), (0, 0)))

    # Tap-concat via three shifted STATIC slices (contiguous copies, no
    # gather): x_sh[:, r, k*Cin:(k+1)*Cin] = x[global row r + k - 2].
    x_sh = jnp.concatenate(
        [x_padded[:, k:k + t_pad + 2, :] for k in range(3)], axis=-1)
    # Per-tile haloed windows (overlap by 2 rows) via static slices.
    x_tap = jnp.stack(
        [x_sh[:, j * tile_t: j * tile_t + tile_t + 2, :] for j in range(n_tiles)],
        axis=1)                                    # (N, nt, tile_t+2, 3*Cin) bf16

    # PyTorch Conv1d weights (Cout, Cin, K) -> MXU-friendly bf16 operands.
    w1 = params["w1"]
    w1cat = jnp.concatenate([w1[:, :, k].T for k in range(3)],
                            axis=0).astype(jnp.bfloat16)        # (3*Cin, 512)
    w2 = params["w2"]
    w2cat = jnp.concatenate([w2[:, :, k].T for k in range(3)],
                            axis=1).astype(jnp.bfloat16)        # (512, 3*128)
    w3t = params["w3"][:, :, 0].astype(jnp.bfloat16)            # (3, 128)
    b1 = params["b1"].reshape(1, C_HIDDEN).astype(jnp.float32)
    b2 = params["b2"].reshape(1, C_MID).astype(jnp.float32)
    b3 = params["b3"].reshape(OUT_DIM, 1).astype(jnp.float32)

    kernel = functools.partial(x1d_kernel, true_t=t)

    feat, x4 = pl.pallas_call(
        kernel,
        out_shape=(jax.ShapeDtypeStruct((n, C_MID, t_pad), jnp.float32),
                   jax.ShapeDtypeStruct((n, OUT_DIM, t_pad), jnp.float32)),
        grid=(n, n_tiles),
        in_specs=[
            pl.BlockSpec((1, 1, tile_t + 2, 3 * cin), lambda i, j: (i, j, 0, 0)),
            pl.BlockSpec((3 * cin, C_HIDDEN), lambda i, j: (0, 0)),
            pl.BlockSpec((1, C_HIDDEN), lambda i, j: (0, 0)),
            pl.BlockSpec((C_HIDDEN, 3 * C_MID), lambda i, j: (0, 0)),
            pl.BlockSpec((1, C_MID), lambda i, j: (0, 0)),
            pl.BlockSpec((OUT_DIM, C_MID), lambda i, j: (0, 0)),
            pl.BlockSpec((OUT_DIM, 1), lambda i, j: (0, 0)),
        ],
        out_specs=[
            pl.BlockSpec((1, C_MID, tile_t), lambda i, j: (i, 0, j)),
            pl.BlockSpec((1, OUT_DIM, tile_t), lambda i, j: (i, 0, j)),
        ],
        compiler_params=pltpu.CompilerParams(
            dimension_semantics=("parallel", "parallel"),
            vmem_limit_bytes=48 * 1024 * 1024),
    )(x_tap, w1cat, b1, w2cat, b2, w3t, b3)

    xc_feat = feat[:, :, :t]                                    # (N, 128, T)
    x4 = x4[:, :, :t]                                           # (N, 3,   T)
    return {"xc_feat": xc_feat, "xc": x4[:, 2:3, :],
            "xb_start": x4[:, 0:1, :], "xb_end": x4[:, 1:2, :]}


def _reference_forward(x_ncl, params, *, rgb=True, feat_dim=FEAT_DIM):
    """Pure-JAX reference (lax.conv_general_dilated) for numerical check."""
    half = feat_dim // 2
    x = x_ncl[:, :half, :] if rgb else x_ncl[:, half:, :]
    dn = ("NCH", "OIH", "NCH")

    def conv(x, w, b, pad):
        y = lax.conv_general_dilated(x, w, window_strides=(1,),
                                     padding=[(pad, pad)],
                                     dimension_numbers=dn)
        return y + b[None, :, None]

    h1 = jax.nn.relu(conv(x, params["w1"], params["b1"], 1))
    h2 = jax.nn.relu(conv(h1, params["w2"], params["b2"], 1))
    x4 = jax.nn.sigmoid(0.01 * conv(h2, params["w3"], params["b3"], 0))
    return {"xc_feat": h2, "xc": x4[:, 2:3], "xb_start": x4[:, 0:1],
            "xb_end": x4[:, 1:2]}


def init_params(key, feat_dim=FEAT_DIM):
    half = feat_dim // 2
    k1, k2, k3, k4, k5, k6 = jax.random.split(key, 6)
    # NOTE: the PyTorch weight_init only touches nn.Conv2d (a no-op here), so
    # layers keep default init; any deterministic init is fine for the test.
    return {
        "w1": 0.1 * jax.random.normal(k1, (C_HIDDEN, half, 3), jnp.float32),
        "b1": 0.1 * jax.random.normal(k2, (C_HIDDEN,), jnp.float32),
        "w2": 0.1 * jax.random.normal(k3, (C_MID, C_HIDDEN, 3), jnp.float32),
        "b2": 0.1 * jax.random.normal(k4, (C_MID,), jnp.float32),
        "w3": 0.1 * jax.random.normal(k5, (OUT_DIM, C_MID, 1), jnp.float32),
        "b3": 0.1 * jax.random.normal(k6, (OUT_DIM,), jnp.float32),
    }


if __name__ == "__main__":
    key = jax.random.PRNGKey(0)
    kx, kp = jax.random.split(key)
    params = init_params(kp)

    # Cases: the module's T=100; a long single-tile T; a single-sample T that
    # triggers the >=2-programs split; and a multi-tile (T > 1024) seam case.
    cases = ((2, 100, True), (2, 640, False), (1, 200, True), (1, 1300, True))
    for (n_batch, t_len, rgb) in cases:
        kx, ksub = jax.random.split(kx)
        x = jax.random.normal(ksub, (n_batch, FEAT_DIM, t_len), jnp.float32)

        out = jax.block_until_ready(x_1d_forward(x, params, rgb=rgb))
        ref = jax.block_until_ready(_reference_forward(x, params, rgb=rgb))

        # bf16 MXU operands (f32 accumulation) => slightly looser tolerance for
        # the 128-channel feature map; sigmoid outputs stay very tight.
        tols = {"xc_feat": (5e-2, 5e-2), "xc": (1e-3, 1e-3),
                "xb_start": (1e-3, 1e-3), "xb_end": (1e-3, 1e-3)}
        for name, (atol, rtol) in tols.items():
            assert out[name].shape == ref[name].shape, (name, out[name].shape)
            max_err = float(jnp.max(jnp.abs(out[name] - ref[name])))
            assert jnp.allclose(out[name], ref[name], atol=atol, rtol=rtol), \
                (name, max_err)

    print("KERNEL_OK")
</pallas_src>

<mosaic_0001>
module attributes {stable_mosaic.version = 11 : i64} {
  func.func @x1d_kernel(%arg0: i32, %arg1: i32, %arg2: memref<1x1x130x12xbf16, #tpu.memory_space<vmem>>, %arg3: memref<12x512xbf16, #tpu.memory_space<vmem>>, %arg4: memref<1x512xf32, #tpu.memory_space<vmem>>, %arg5: memref<512x384xbf16, #tpu.memory_space<vmem>>, %arg6: memref<1x128xf32, #tpu.memory_space<vmem>>, %arg7: memref<3x128xbf16, #tpu.memory_space<vmem>>, %arg8: memref<3x1xf32, #tpu.memory_space<vmem>>, %arg9: memref<1x128x128xf32, #tpu.memory_space<vmem>>, %arg10: memref<1x3x128xf32, #tpu.memory_space<vmem>>) attributes {dimension_semantics = [#tpu.dimension_semantics<parallel>, #tpu.dimension_semantics<parallel>], iteration_bounds = array<i64: 2, 1>, scalar_prefetch = 0 : i64, scratch_operands = 0 : i64, tpu.core_type = #tpu.core_type<tc>, window_params = [{transform_indices = @transform_0, window_bounds = array<i64: 1, 1, 130, 12>}, {pipeline_mode = #tpu.pipeline_mode<synchronous>, transform_indices = @transform_1, window_bounds = array<i64: 12, 512>}, {pipeline_mode = #tpu.pipeline_mode<synchronous>, transform_indices = @transform_2, window_bounds = array<i64: 1, 512>}, {pipeline_mode = #tpu.pipeline_mode<synchronous>, transform_indices = @transform_3, window_bounds = array<i64: 512, 384>}, {pipeline_mode = #tpu.pipeline_mode<synchronous>, transform_indices = @transform_4, window_bounds = array<i64: 1, 128>}, {pipeline_mode = #tpu.pipeline_mode<synchronous>, transform_indices = @transform_5, window_bounds = array<i64: 3, 128>}, {pipeline_mode = #tpu.pipeline_mode<synchronous>, transform_indices = @transform_6, window_bounds = array<i64: 3, 1>}, {transform_indices = @transform_7, window_bounds = array<i64: 1, 128, 128>}, {transform_indices = @transform_8, window_bounds = array<i64: 1, 3, 128>}]} {
    %c0 = arith.constant 0 : index
    %c0_0 = arith.constant 0 : index
    %c0_1 = arith.constant 0 : index
    %c0_2 = arith.constant 0 : index
    %0 = vector.load %arg2[%c0, %c0_0, %c0_1, %c0_2] : memref<1x1x130x12xbf16, #tpu.memory_space<vmem>>, vector<1x1x130x12xbf16>
    %1 = vector.shape_cast %0 : vector<1x1x130x12xbf16> to vector<130x12xbf16>
    %c0_3 = arith.constant 0 : index
    %c0_4 = arith.constant 0 : index
    %2 = vector.load %arg3[%c0_3, %c0_4] : memref<12x512xbf16, #tpu.memory_space<vmem>>, vector<12x512xbf16>
    %cst = arith.constant dense<0.000000e+00> : vector<130x512xf32>
    %3 = tpu.matmul %1, %2, %cst {dimension_numbers = #tpu.dot_dimension_numbers<[1], [0], [0], [1], [0, 0, 1, 1], [], []>} : vector<130x12xbf16>, vector<12x512xbf16>, vector<130x512xf32> -> vector<130x512xf32>
    %c0_5 = arith.constant 0 : index
    %c0_6 = arith.constant 0 : index
    %4 = vector.load %arg4[%c0_5, %c0_6] : memref<1x512xf32, #tpu.memory_space<vmem>>, vector<1x512xf32>
    %5 = vector.broadcast %4 : vector<1x512xf32> to vector<130x512xf32>
    %6 = arith.addf %3, %5 : vector<130x512xf32>
    %cst_7 = arith.constant 0.000000e+00 : f32
    %7 = vector.broadcast %cst_7 : f32 to vector<130x512xf32>
    %8 = arith.maximumf %6, %7 : vector<130x512xf32>
    %9 = arith.truncf %8 : vector<130x512xf32> to vector<130x512xbf16>
    %10 = tpu.iota {dimensions = array<i32: 0>} : vector<130x1xi32>
    %c128_i32 = arith.constant 128 : i32
    %11 = arith.muli %arg1, %c128_i32 : i32
    %c1_i32 = arith.constant 1 : i32
    %12 = arith.subi %11, %c1_i32 : i32
    %13 = vector.broadcast %12 : i32 to vector<130x1xi32>
    %14 = arith.addi %10, %13 : vector<130x1xi32>
    %c0_i32 = arith.constant 0 : i32
    %15 = vector.broadcast %c0_i32 : i32 to vector<130x1xi32>
    %16 = arith.cmpi sge, %14, %15 : vector<130x1xi32>
    %c100_i32 = arith.constant 100 : i32
    %17 = vector.broadcast %c100_i32 : i32 to vector<130x1xi32>
    %18 = arith.cmpi slt, %14, %17 : vector<130x1xi32>
    %19 = arith.andi %16, %18 : vector<130x1xi1>
    %cst_8 = arith.constant 0.000000e+00 : f32
    %20 = arith.truncf %cst_8 : f32 to bf16
    %21 = vector.shape_cast %19 : vector<130x1xi1> to vector<130x1xi1>
    %22 = vector.broadcast %21 : vector<130x1xi1> to vector<130x512xi1>
    %23 = vector.broadcast %20 : bf16 to vector<130x512xbf16>
    %24 = arith.select %22, %9, %23 : vector<130x512xi1>, vector<130x512xbf16>
    %c0_9 = arith.constant 0 : index
    %c0_10 = arith.constant 0 : index
    %25 = vector.load %arg5[%c0_9, %c0_10] : memref<512x384xbf16, #tpu.memory_space<vmem>>, vector<512x384xbf16>
    %cst_11 = arith.constant dense<0.000000e+00> : vector<130x384xf32>
    %26 = tpu.matmul %24, %25, %cst_11 {dimension_numbers = #tpu.dot_dimension_numbers<[1], [0], [0], [1], [0, 0, 1, 1], [], []>} : vector<130x512xbf16>, vector<512x384xbf16>, vector<130x384xf32> -> vector<130x384xf32>
    %27 = vector.extract_strided_slice %26 {offsets = [0, 0], sizes = [128, 128], strides = [1, 1]} : vector<130x384xf32> to vector<128x128xf32>
    %28 = vector.extract_strided_slice %26 {offsets = [1, 128], sizes = [128, 128], strides = [1, 1]} : vector<130x384xf32> to vector<128x128xf32>
    %29 = arith.addf %27, %28 : vector<128x128xf32>
    %30 = vector.extract_strided_slice %26 {offsets = [2, 256], sizes = [128, 128], strides = [1, 1]} : vector<130x384xf32> to vector<128x128xf32>
    %31 = arith.addf %29, %30 : vector<128x128xf32>
    %c0_12 = arith.constant 0 : index
    %c0_13 = arith.constant 0 : index
    %32 = vector.load %arg6[%c0_12, %c0_13] : memref<1x128xf32, #tpu.memory_space<vmem>>, vector<1x128xf32>
    %33 = vector.broadcast %32 : vector<1x128xf32> to vector<128x128xf32>
    %34 = arith.addf %31, %33 : vector<128x128xf32>
    %cst_14 = arith.constant 0.000000e+00 : f32
    %35 = vector.broadcast %cst_14 : f32 to vector<128x128xf32>
    %36 = arith.maximumf %34, %35 : vector<128x128xf32>
    %37 = tpu.transpose %36, [1, 0] : vector<128x128xf32> -> vector<128x128xf32>
    %c0_15 = arith.constant 0 : index
    %c0_16 = arith.constant 0 : index
    %c0_17 = arith.constant 0 : index
    %38 = vector.load %arg9[%c0_15, %c0_16, %c0_17] : memref<1x128x128xf32, #tpu.memory_space<vmem>>, vector<1x128x128xf32>
    %39 = vector.shape_cast %38 : vector<1x128x128xf32> to vector<128x128xf32>
    %40 = vector.shape_cast %37 : vector<128x128xf32> to vector<1x128x128xf32>
    tpu.vector_store %arg9[%c0_15, %c0_16, %c0_17], %40 {strides = array<i32>} : memref<1x128x128xf32, #tpu.memory_space<vmem>>, vector<1x128x128xf32>,
    %c0_18 = arith.constant 0 : index
    %c0_19 = arith.constant 0 : index
    %41 = vector.load %arg7[%c0_18, %c0_19] : memref<3x128xbf16, #tpu.memory_space<vmem>>, vector<3x128xbf16>
    %42 = arith.truncf %37 : vector<128x128xf32> to vector<128x128xbf16>
    %cst_20 = arith.constant dense<0.000000e+00> : vector<3x128xf32>
    %43 = tpu.matmul %41, %42, %cst_20 {dimension_numbers = #tpu.dot_dimension_numbers<[1], [0], [0], [1], [0, 0, 1, 1], [], []>} : vector<3x128xbf16>, vector<128x128xbf16>, vector<3x128xf32> -> vector<3x128xf32>
    %c0_21 = arith.constant 0 : index
    %c0_22 = arith.constant 0 : index
    %44 = vector.load %arg8[%c0_21, %c0_22] : memref<3x1xf32, #tpu.memory_space<vmem>>, vector<3x1xf32>
    %45 = vector.broadcast %44 : vector<3x1xf32> to vector<3x128xf32>
    %46 = arith.addf %43, %45 : vector<3x128xf32>
    %cst_23 = arith.constant 0.00999999977 : f32
    %47 = vector.broadcast %cst_23 : f32 to vector<3x128xf32>
    %48 = arith.mulf %47, %46 : vector<3x128xf32>
    %49 = arith.negf %48 : vector<3x128xf32>
    %50 = math.exp %49 : vector<3x128xf32>
    %cst_24 = arith.constant 1.000000e+00 : f32
    %51 = vector.broadcast %cst_24 : f32 to vector<3x128xf32>
    %52 = arith.addf %51, %50 : vector<3x128xf32>
    %53 = arith.divf %51, %52 : vector<3x128xf32>
    %c0_25 = arith.constant 0 : index
    %c0_26 = arith.constant 0 : index
    %c0_27 = arith.constant 0 : index
    %54 = vector.load %arg10[%c0_25, %c0_26, %c0_27] : memref<1x3x128xf32, #tpu.memory_space<vmem>>, vector<1x3x128xf32>
    %55 = vector.shape_cast %54 : vector<1x3x128xf32> to vector<3x128xf32>
    %56 = vector.shape_cast %53 : vector<3x128xf32> to vector<1x3x128xf32>
    tpu.vector_store %arg10[%c0_25, %c0_26, %c0_27], %56 {strides = array<i32>} : memref<1x3x128xf32, #tpu.memory_space<vmem>>, vector<1x3x128xf32>,
    return
  }
  func.func @transform_0(%arg0: i32, %arg1: i32) -> (i32, i32, i32, i32) {
    %c0_i32 = arith.constant 0 : i32
    %c0_i32_0 = arith.constant 0 : i32
    %c0_i32_1 = arith.constant 0 : i32
    return %arg0, %arg1, %c0_i32, %c0_i32_0 : i32, i32, i32, i32
  }
  func.func @transform_1(%arg0: i32, %arg1: i32) -> (i32, i32) {
    %c0_i32 = arith.constant 0 : i32
    %c0_i32_0 = arith.constant 0 : i32
    %c0_i32_1 = arith.constant 0 : i32
    return %c0_i32, %c0_i32_0 : i32, i32
  }
  func.func @transform_2(%arg0: i32, %arg1: i32) -> (i32, i32) {
    %c0_i32 = arith.constant 0 : i32
    %c0_i32_0 = arith.constant 0 : i32
    %c0_i32_1 = arith.constant 0 : i32
    return %c0_i32, %c0_i32_0 : i32, i32
  }
  func.func @transform_3(%arg0: i32, %arg1: i32) -> (i32, i32) {
    %c0_i32 = arith.constant 0 : i32
    %c0_i32_0 = arith.constant 0 : i32
    %c0_i32_1 = arith.constant 0 : i32
    return %c0_i32, %c0_i32_0 : i32, i32
  }
  func.func @transform_4(%arg0: i32, %arg1: i32) -> (i32, i32) {
    %c0_i32 = arith.constant 0 : i32
    %c0_i32_0 = arith.constant 0 : i32
    %c0_i32_1 = arith.constant 0 : i32
    return %c0_i32, %c0_i32_0 : i32, i32
  }
  func.func @transform_5(%arg0: i32, %arg1: i32) -> (i32, i32) {
    %c0_i32 = arith.constant 0 : i32
    %c0_i32_0 = arith.constant 0 : i32
    %c0_i32_1 = arith.constant 0 : i32
    return %c0_i32, %c0_i32_0 : i32, i32
  }
  func.func @transform_6(%arg0: i32, %arg1: i32) -> (i32, i32) {
    %c0_i32 = arith.constant 0 : i32
    %c0_i32_0 = arith.constant 0 : i32
    %c0_i32_1 = arith.constant 0 : i32
    return %c0_i32, %c0_i32_0 : i32, i32
  }
  func.func @transform_7(%arg0: i32, %arg1: i32) -> (i32, i32, i32) {
    %c0_i32 = arith.constant 0 : i32
    %c0_i32_0 = arith.constant 0 : i32
    return %arg0, %c0_i32, %arg1 : i32, i32, i32
  }
  func.func @transform_8(%arg0: i32, %arg1: i32) -> (i32, i32, i32) {
    %c0_i32 = arith.constant 0 : i32
    %c0_i32_0 = arith.constant 0 : i32
    return %arg0, %c0_i32, %arg1 : i32, i32, i32
  }
}

</mosaic_0001>

<llo_original>
// kernel: tpu_custom_call.1
$region0: #{tpu_custom_call.1}
  #allocation0 [shape = 'u32[]', space=smem, size = 0x4, offset = 0x4, fixed_abs, tag = 'smem constant byte address 0x4 - core index']
  #allocation1 [shape = 'u32[144,128]{1,0:T(1,128)}', space=vmem, size = 0x12000, scoped, tag = 'internal scratch']
  %s0 = inlined_call_operand.vmem [shape: bf16[2,1,130,12], index: 0, kind: input, shape index: {}]
  %s1 = inlined_call_operand.vmem [shape: bf16[12,512], index: 1, kind: input, shape index: {}]
  %s2 = inlined_call_operand.vmem [shape: f32[1,512], index: 2, kind: input, shape index: {}]
  %s3 = inlined_call_operand.hbm [shape: bf16[512,384], index: 3, kind: input, shape index: {}]
  %s4 = inlined_call_operand.vmem [shape: f32[1,128], index: 4, kind: input, shape index: {}]
  %s5 = inlined_call_operand.vmem [shape: bf16[3,128], index: 5, kind: input, shape index: {}]
  %s6 = inlined_call_operand.vmem [shape: f32[3,1], index: 6, kind: input, shape index: {}]
  %s7 = inlined_call_operand.hbm [shape: f32[2,128,128], index: 7, kind: output, shape index: {0}]
  %s8 = inlined_call_operand.vmem [shape: f32[2,3,128], index: 8, kind: output, shape index: {1}]
  %9 = xla_tuple %s7, %s8
  %s10 = sld [smem:[#allocation0]]
  $region73: #{tpu_custom_call.1} parent=0
    _
  %s12 = ssub.s32 1, %s10
  %s13 = scalar_select 0, %s12, %s10
  $region1: #{tpu_custom_call.1} parent=0
    #allocation2 [shape = 'u8[393216]{0}', space=vmem, size = 0x60000, scoped, tag = 'input window, operand 3, single buffered']
    #allocation3 [shape = 's32[2]{0}', space=sflag, size = 0x8, scoped, tag = 'scoped memory for tpu_custom_call.1']
    #allocation4 [shape = 's32[2]{0}', space=sflag, size = 0x8, scoped, tag = 'scoped memory for tpu_custom_call.1']
    #allocation5 [shape = 'u8[131072]{0}', space=vmem, size = 0x20000, scoped, tag = 'output window, operand 0']
    %14 = vsyncpa [#allocation3], 0
    %15 = vsyncpa [#allocation4], 0
    %s16 = scalar_lea.sflag [#allocation4], 1
    %17 = vsyncpa %s16, 0
    loop: start=0, step=1, limit=4
    $region2: #{tpu_custom_call.1} parent=1 // loop_pre_header
      _
    $region3: #{tpu_custom_call.1} parent=1 // loop_header
      %s19 = sphi 0, %s23
      %p20 = scmp.ge.s32.totalorder %s19, 4
      %s26 = sphi 0, %s38
      %s27 = sphi 0, %s34
      %s28 = sphi 0, %s26
      %s29 = sphi 0, %s27
      %s30 = sphi 0, %s28
      %s31 = sphi 0, %s29
      %s43 = sphi 0, %s45
      %s46 = sphi 0, %s43
      %s47 = sphi 0, %s46
      %s63 = sphi 0, %s47
      %s67 = sphi 0, %s67
      %s69 = sphi 0, %s67
      %s70 = sphi 0, %s69
      %s84 = sphi 0, %s70
      %s88 = sphi 0, %s88
      %s90 = sphi 0, %s88
      %s91 = sphi 0, %s90
      %s105 = sphi 0, %s91
      %s109 = sphi 0, %s109
      %s111 = sphi 0, %s109
      %s112 = sphi 0, %s111
      %s126 = sphi 0, %s112
      %s130 = sphi 0, %s130
      %s132 = sphi 0, %s130
      %s133 = sphi 0, %s132
      %s147 = sphi 0, %s133
      %s151 = sphi 0, %s151
      %s153 = sphi 0, %s151
      %s154 = sphi 0, %s153
      %s168 = sphi 0, %s154
      %s172 = sphi 0, %s172
      %s174 = sphi 0, %s172
      %s175 = sphi 0, %s174
      %s189 = sphi 0, %s175
      %s197 = sphi 0, %s199
      %s200 = sphi 0, %s197
      %s201 = sphi 0, %s200
      %s217 = sphi 0, %s201
      %s225 = sphi 0, %s227
      %s228 = sphi 0, %s225
      %s229 = sphi 0, %s228
      %s245 = sphi 0, %s229
    $region4: #{tpu_custom_call.1} parent=1 // loop_header_branch
      %22 = sbr.rel (%p20) target = $region8
    $region5: #{tpu_custom_call.1} parent=1 // loop_body
      %s24 = ssub.s32 %s19, 1
      %s25 = ssub.s32 %s19, 2
      %s32 = sadd.s32 1, %s27
      %p33 = scmp.ge.s32.totalorder %s32, 1
      %s34 = scalar_select %p33, 0, %s32
      %s35 = sadd.s32 1, %s26
      %s36 = scalar_select %p33, %s35, %s26
      %p37 = scmp.ge.s32.totalorder %s36, 2
      %s38 = scalar_select %p37, 0, %s36
      %s39 = ssub.s32 %s26, %s38
      %s40 = ssub.s32 %s27, %s34
      %s41 = sor.u32 %s39, %s40
      %p42 = scmp.eq.s32.totalorder %s41, 0
      %s44 = sadd.s32 %s43, 1
      %s45 = scalar_select %p42, %s43, %s44
      %p48 = pneg %p42
      %p49 = scmp.eq.s32.totalorder %s19, 1
      %p50 = por %p48, %p49
      %p51 = scmp.ne.s32.totalorder %s43, %s46
      %p52 = scmp.eq.s32.totalorder %s19, 0
      %p53 = por %p51, %p52
      %p54 = scmp.ne.s32.totalorder %s43, %s46
      %p55 = scmp.eq.s32.totalorder %s24, 1
      %p56 = por %p54, %p55
      %p57 = scmp.ne.s32.totalorder %s46, %s47
      %p58 = scmp.eq.s32.totalorder %s24, 0
      %p59 = por %p57, %p58
      %p60 = scmp.ne.s32.totalorder %s46, %s47
      %p61 = scmp.eq.s32.totalorder %s25, 1
      %p62 = por %p60, %p61
      %p64 = scmp.ne.s32.totalorder %s47, %s63
      %p65 = scmp.eq.s32.totalorder %s25, 0
      %p66 = por %p64, %p65
      %s68 = sadd.s32 %s67, 1
      %p71 = scmp.eq.s32.totalorder %s19, 1
      %p72 = scmp.ne.s32.totalorder %s67, %s69
      %p73 = scmp.eq.s32.totalorder %s19, 0
      %p74 = por %p72, %p73
      %p75 = scmp.ne.s32.totalorder %s67, %s69
      %p76 = scmp.eq.s32.totalorder %s24, 1
      %p77 = por %p75, %p76
      %p78 = scmp.ne.s32.totalorder %s69, %s70
      %p79 = scmp.eq.s32.totalorder %s24, 0
      %p80 = por %p78, %p79
      %p81 = scmp.ne.s32.totalorder %s69, %s70
      %p82 = scmp.eq.s32.totalorder %s25, 1
      %p83 = por %p81, %p82
      %p85 = scmp.ne.s32.totalorder %s70, %s84
      %p86 = scmp.eq.s32.totalorder %s25, 0
      %p87 = por %p85, %p86
      %s89 = sadd.s32 %s88, 1
      %p92 = scmp.eq.s32.totalorder %s19, 1
      %p93 = scmp.ne.s32.totalorder %s88, %s90
      %p94 = scmp.eq.s32.totalorder %s19, 0
      %p95 = por %p93, %p94
      %p96 = scmp.ne.s32.totalorder %s88, %s90
      %p97 = scmp.eq.s32.totalorder %s24, 1
      %p98 = por %p96, %p97
      %p99 = scmp.ne.s32.totalorder %s90, %s91
      %p100 = scmp.eq.s32.totalorder %s24, 0
      %p101 = por %p99, %p100
      %p102 = scmp.ne.s32.totalorder %s90, %s91
      %p103 = scmp.eq.s32.totalorder %s25, 1
      %p104 = por %p102, %p103
      %p106 = scmp.ne.s32.totalorder %s91, %s105
      %p107 = scmp.eq.s32.totalorder %s25, 0
      %p108 = por %p106, %p107
      %s110 = sadd.s32 %s109, 1
      %p113 = scmp.eq.s32.totalorder %s19, 1
      %p114 = scmp.ne.s32.totalorder %s109, %s111
      %p115 = scmp.eq.s32.totalorder %s19, 0
      %p116 = por %p114, %p115
      %p117 = scmp.ne.s32.totalorder %s109, %s111
      %p118 = scmp.eq.s32.totalorder %s24, 1
      %p119 = por %p117, %p118
      %p120 = scmp.ne.s32.totalorder %s111, %s112
      %p121 = scmp.eq.s32.totalorder %s24, 0
      %p122 = por %p120, %p121
      %p123 = scmp.ne.s32.totalorder %s111, %s112
      %p124 = scmp.eq.s32.totalorder %s25, 1
      %p125 = por %p123, %p124
      %p127 = scmp.ne.s32.totalorder %s112, %s126
      %p128 = scmp.eq.s32.totalorder %s25, 0
      %p129 = por %p127, %p128
      %s131 = sadd.s32 %s130, 1
      %p134 = scmp.eq.s32.totalorder %s19, 1
      %p135 = scmp.ne.s32.totalorder %s130, %s132
      %p136 = scmp.eq.s32.totalorder %s19, 0
      %p137 = por %p135, %p136
      %p138 = scmp.ne.s32.totalorder %s130, %s132
      %p139 = scmp.eq.s32.totalorder %s24, 1
      %p140 = por %p138, %p139
      %p141 = scmp.ne.s32.totalorder %s132, %s133
      %p142 = scmp.eq.s32.totalorder %s24, 0
      %p143 = por %p141, %p142
      %p144 = scmp.ne.s32.totalorder %s132, %s133
      %p145 = scmp.eq.s32.totalorder %s25, 1
      %p146 = por %p144, %p145
      %p148 = scmp.ne.s32.totalorder %s133, %s147
      %p149 = scmp.eq.s32.totalorder %s25, 0
      %p150 = por %p148, %p149
      %s152 = sadd.s32 %s151, 1
      %p155 = scmp.eq.s32.totalorder %s19, 1
      %p156 = scmp.ne.s32.totalorder %s151, %s153
      %p157 = scmp.eq.s32.totalorder %s19, 0
      %p158 = por %p156, %p157
      %p159 = scmp.ne.s32.totalorder %s151, %s153
      %p160 = scmp.eq.s32.totalorder %s24, 1
      %p161 = por %p159, %p160
      %p162 = scmp.ne.s32.totalorder %s153, %s154
      %p163 = scmp.eq.s32.totalorder %s24, 0
      %p164 = por %p162, %p163
      %p165 = scmp.ne.s32.totalorder %s153, %s154
      %p166 = scmp.eq.s32.totalorder %s25, 1
      %p167 = por %p165, %p166
      %p169 = scmp.ne.s32.totalorder %s154, %s168
      %p170 = scmp.eq.s32.totalorder %s25, 0
      %p171 = por %p169, %p170
      %s173 = sadd.s32 %s172, 1
      %p176 = scmp.eq.s32.totalorder %s19, 1
      %p177 = scmp.ne.s32.totalorder %s172, %s174
      %p178 = scmp.eq.s32.totalorder %s19, 0
      %p179 = por %p177, %p178
      %p180 = scmp.ne.s32.totalorder %s172, %s174
      %p181 = scmp.eq.s32.totalorder %s24, 1
      %p182 = por %p180, %p181
      %p183 = scmp.ne.s32.totalorder %s174, %s175
      %p184 = scmp.eq.s32.totalorder %s24, 0
      %p185 = por %p183, %p184
      %p186 = scmp.ne.s32.totalorder %s174, %s175
      %p187 = scmp.eq.s32.totalorder %s25, 1
      %p188 = por %p186, %p187
      %p190 = scmp.ne.s32.totalorder %s175, %s189
      %p191 = scmp.eq.s32.totalorder %s25, 0
      %p192 = por %p190, %p191
      %s193 = ssub.s32 %s26, %s38
      %s194 = ssub.s32 %s27, %s34
      %s195 = sor.u32 %s193, %s194
      %p196 = scmp.eq.s32.totalorder %s195, 0
      %s198 = sadd.s32 %s197, 1
      %s199 = scalar_select %p196, %s197, %s198
      %p202 = pneg %p196
      %p203 = scmp.eq.s32.totalorder %s19, 1
      %p204 = por %p202, %p203
      %p205 = scmp.ne.s32.totalorder %s197, %s200
      %p206 = scmp.eq.s32.totalorder %s19, 0
      %p207 = por %p205, %p206
      %p208 = scmp.ne.s32.totalorder %s197, %s200
      %p209 = scmp.eq.s32.totalorder %s24, 1
      %p210 = por %p208, %p209
      %p211 = scmp.ne.s32.totalorder %s200, %s201
      %p212 = scmp.eq.s32.totalorder %s24, 0
      %p213 = por %p211, %p212
      %p214 = scmp.ne.s32.totalorder %s200, %s201
      %p215 = scmp.eq.s32.totalorder %s25, 1
      %p216 = por %p214, %p215
      %p218 = scmp.ne.s32.totalorder %s201, %s217
      %p219 = scmp.eq.s32.totalorder %s25, 0
      %p220 = por %p218, %p219
      %s221 = ssub.s32 %s26, %s38
      %s222 = ssub.s32 %s27, %s34
      %s223 = sor.u32 %s221, %s222
      %p224 = scmp.eq.s32.totalorder %s223, 0
      %s226 = sadd.s32 %s225, 1
      %s227 = scalar_select %p224, %s225, %s226
      %p230 = pneg %p224
      %p231 = scmp.eq.s32.totalorder %s19, 1
      %p232 = por %p230, %p231
      %p233 = scmp.ne.s32.totalorder %s225, %s228
      %p234 = scmp.eq.s32.totalorder %s19, 0
      %p235 = por %p233, %p234
      %p236 = scmp.ne.s32.totalorder %s225, %s228
      %p237 = scmp.eq.s32.totalorder %s24, 1
      %p238 = por %p236, %p237
      %p239 = scmp.ne.s32.totalorder %s228, %s229
      %p240 = scmp.eq.s32.totalorder %s24, 0
      %p241 = por %p239, %p240
      %p242 = scmp.ne.s32.totalorder %s228, %s229
      %p243 = scmp.eq.s32.totalorder %s25, 1
      %p244 = por %p242, %p243
      %p246 = scmp.ne.s32.totalorder %s229, %s245
      %p247 = scmp.eq.s32.totalorder %s25, 0
      %p248 = por %p246, %p247
      %p249 = scmp.le.s32.totalorder 1, %s19
      %p250 = scmp.lt.s32.totalorder %s19, 3
      %p251 = pnand %p249, %p250
      %p252 = pneg %p251
      // Predicated region
      $region9: #{tpu_custom_call.1} parent=5 // pred_check
        _
      $region10: #{tpu_custom_call.1} parent=5 // pred_check_branch
        %254 = sbr.rel (%p251) target = $region12
      $region11: #{tpu_custom_call.1} parent=5 // pred_region
        %s255 = ssub.s32 %s19, 1
        // Predicated region
        $region13: #{tpu_custom_call.1} parent=11 // pred_check
          %p256 = pneg %p80
        $region14: #{tpu_custom_call.1} parent=11 // pred_check_branch
          %258 = sbr.rel (%p256) target = $region16
        $region15: #{tpu_custom_call.1} parent=11 // pred_region
          _
        $region16: #{tpu_custom_call.1} parent=11 // pred_fallthru
          _
        // Predicated region
        $region17: #{tpu_custom_call.1} parent=11 // pred_check
          %p259 = pneg %p101
        $region18: #{tpu_custom_call.1} parent=11 // pred_check_branch
          %261 = sbr.rel (%p259) target = $region20
        $region19: #{tpu_custom_call.1} parent=11 // pred_region
          _
        $region20: #{tpu_custom_call.1} parent=11 // pred_fallthru
          _
        // Predicated region
        $region21: #{tpu_custom_call.1} parent=11 // pred_check
          %p262 = pneg %p122
        $region22: #{tpu_custom_call.1} parent=11 // pred_check_branch
          %264 = sbr.rel (%p262) target = $region24
        $region23: #{tpu_custom_call.1} parent=11 // pred_region
          %s266 = ssub.s32 12288, 12288
          %267 = vsyncadd [#allocation3], %s266
          %s268 = sshll.u32 [#allocation2], 4
          %s269 = int_to_ptr.vmem [resolvable:$true] %s268
          %274 = dma.hbm_to_vmem [thread:$0]  %s3, 12288, %s269, [#allocation3], 192, 192, 12
        $region24: #{tpu_custom_call.1} parent=11 // pred_fallthru
          _
        // Predicated region
        $region25: #{tpu_custom_call.1} parent=11 // pred_check
          %p275 = pneg %p143
        $region26: #{tpu_custom_call.1} parent=11 // pred_check_branch
          %277 = sbr.rel (%p275) target = $region28
        $region27: #{tpu_custom_call.1} parent=11 // pred_region
          _
        $region28: #{tpu_custom_call.1} parent=11 // pred_fallthru
          _
        // Predicated region
        $region29: #{tpu_custom_call.1} parent=11 // pred_check
          %p278 = pneg %p164
        $region30: #{tpu_custom_call.1} parent=11 // pred_check_branch
          %280 = sbr.rel (%p278) target = $region32
        $region31: #{tpu_custom_call.1} parent=11 // pred_region
          _
        $region32: #{tpu_custom_call.1} parent=11 // pred_fallthru
          _
        // Predicated region
        $region33: #{tpu_custom_call.1} parent=11 // pred_check
          %p281 = pneg %p185
        $region34: #{tpu_custom_call.1} parent=11 // pred_check_branch
          %283 = sbr.rel (%p281) target = $region36
        $region35: #{tpu_custom_call.1} parent=11 // pred_region
          _
        $region36: #{tpu_custom_call.1} parent=11 // pred_fallthru
          _
      $region12: #{tpu_custom_call.1} parent=5 // pred_fallthru
        _
      %p284 = scmp.lt.s32.totalorder %s19, 2
      // Predicated region
      $region37: #{tpu_custom_call.1} parent=5 // pred_check
        %p285 = pneg %p284
      $region38: #{tpu_custom_call.1} parent=5 // pred_check_branch
        %287 = sbr.rel (%p285) target = $region40
      $region39: #{tpu_custom_call.1} parent=5 // pred_region
        // Predicated region
        $region41: #{tpu_custom_call.1} parent=39 // pred_check
          %p288 = pneg %p53
        $region42: #{tpu_custom_call.1} parent=39 // pred_check_branch
          %290 = sbr.rel (%p288) target = $region44
        $region43: #{tpu_custom_call.1} parent=39 // pred_region
          %p291 = scmp.lt.s32.totalorder %s26, 1
          %s292 = scalar_select %p291, %s26, 1
          %p293 = scmp.lt.s32.totalorder %s27, 0
          %s294 = scalar_select %p293, %s27, 0
          %s295 = smul.addr %s294, 17
          %s296 = smul.addr %s292, 17
          %s297 = sadd.s32 %s295, %s296
          %s298 = smul.addr %s297, 4
          %s299 = scalar_lea.vmem %s0, %s298
        $region44: #{tpu_custom_call.1} parent=39 // pred_fallthru
          _
      $region40: #{tpu_custom_call.1} parent=5 // pred_fallthru
        _
      %p300 = scmp.le.s32.totalorder 1, %s19
      %p301 = scmp.lt.s32.totalorder %s19, 3
      %p302 = pnand %p300, %p301
      %p303 = pneg %p302
      // Predicated region
      $region45: #{tpu_custom_call.1} parent=5 // pred_check
        _
      $region46: #{tpu_custom_call.1} parent=5 // pred_check_branch
        %305 = sbr.rel (%p302) target = $region48
      $region47: #{tpu_custom_call.1} parent=5 // pred_region
        %s306 = ssub.s32 %s19, 1
        // Predicated region
        $region49: #{tpu_custom_call.1} parent=47 // pred_check
          %p307 = pneg %p122
        $region50: #{tpu_custom_call.1} parent=47 // pred_check_branch
          %309 = sbr.rel (%p307) target = $region52
        $region51: #{tpu_custom_call.1} parent=47 // pred_region
          %310 = dma.done [#allocation3], 12288
        $region52: #{tpu_custom_call.1} parent=47 // pred_fallthru
          _
        %p311 = scmp.lt.s32.totalorder %s28, 1
        %s312 = scalar_select %p311, %s28, 1
        %p313 = scmp.lt.s32.totalorder %s29, 0
        %s314 = scalar_select %p313, %s29, 0
        %s315 = smul.addr %s314, 17
        %s316 = smul.addr %s312, 17
        %s317 = sadd.s32 %s315, %s316
        %s318 = smul.addr %s317, 4
        %s319 = scalar_lea.vmem %s0, %s318
        %p320 = pneg %p59
        %p321 = pneg %p56
        %p322 = pneg %p80
        %p323 = pneg %p77
        %p324 = pneg %p101
        %p325 = pneg %p98
        %p326 = pneg %p122
        %p327 = pneg %p119
        %p328 = pneg %p143
        %p329 = pneg %p140
        %p330 = pneg %p164
        %p331 = pneg %p161
        %p332 = pneg %p185
        %p333 = pneg %p182
        %p334 = pneg %p213
        %p335 = pneg %p210
        %s336 = sand.u32 %s200, 1
        %s337 = scalar_lea.sflag [#allocation4], %s336
        %s338 = sand.u32 %s200, 1
        %s339 = smul.addr %s338, 128
        %s340 = scalar_lea.vmem [#allocation5], %s339
        %p341 = pneg %p241
        %p342 = pneg %p238
        %p343 = scmp.lt.s32.totalorder %s28, 1
        %s344 = scalar_select %p343, %s28, 1
        %p345 = scmp.lt.s32.totalorder %s29, 0
        %s346 = scalar_select %p345, %s29, 0
        %s347 = sadd.s32 %s346, %s344
        %s348 = smul.addr %s347, 4
        %s349 = scalar_lea.vmem %s8, %s348
        %p350 = scmp.lt.s32.totalorder %s28, 1
        %s351 = scalar_select %p350, %s28, 1
        %p352 = scmp.lt.s32.totalorder %s29, 0
        %s353 = scalar_select %p352, %s29, 0
        %s354 = smul.addr %s353, 17
        %s355 = smul.addr %s351, 17
        %s356 = sadd.s32 %s354, %s355
        %s357 = smul.addr %s356, 4
        %s358 = scalar_lea.vmem %s0, %s357
        %p359 = scmp.lt.s32.totalorder %s28, 1
        %s360 = scalar_select %p359, %s28, 1
        %p361 = scmp.lt.s32.totalorder %s29, 0
        %s362 = scalar_select %p361, %s29, 0
        %s363 = sadd.s32 %s362, %s360
        %s364 = smul.addr %s363, 4
        %s365 = scalar_lea.vmem %s8, %s364
        %v369 = vld [vmem:[%s358] sm:$0xf]
        %v370 = vld [vmem:[%s358 + $0x4] sm:$0xf]
        %v371 = vld [vmem:[%s358 + $0x8] sm:$0xf]
        %v372 = vld [vmem:[%s358 + $0xc] sm:$0xf]
        %v373 = vld [vmem:[%s358 + $0x10] sm:$0xf]
        %v374 = vld [vmem:[%s358 + $0x14] sm:$0xf]
        %v375 = vld [vmem:[%s358 + $0x18] sm:$0xf]
        %v376 = vld [vmem:[%s358 + $0x1c] sm:$0xf]
        %v377 = vld [vmem:[%s358 + $0x20] sm:$0xf]
        %v378 = vld [vmem:[%s358 + $0x24] sm:$0xf]
        %v379 = vld [vmem:[%s358 + $0x28] sm:$0xf]
        %v380 = vld [vmem:[%s358 + $0x2c] sm:$0xf]
        %v381 = vld [vmem:[%s358 + $0x30] sm:$0xf]
        %v382 = vld [vmem:[%s358 + $0x34] sm:$0xf]
        %v383 = vld [vmem:[%s358 + $0x38] sm:$0xf]
        %v384 = vld [vmem:[%s358 + $0x3c] sm:$0xf]
        %v385 = vld [vmem:[%s358 + $0x40] sm:$0x1]
        %v386 = vld [vmem:[%s1] sm:$0xff]
        %v387 = vld [vmem:[%s1 + $0x8] sm:$0xff]
        %v388 = vld [vmem:[%s1 + $0x10] sm:$0x33]
        %v389 = vld [vmem:[%s1 + $0x18] sm:$0x33]
        %v390 = vld [vmem:[%s2] sm:$0xf]
        %v392 = vlaneseq
        %v393 = vshrl.u32 %v392, 7
        %v394 = vsub.s32 0, %v393
        %v395 = vrot.slane %v390, %v394
        %v396 = vlaneseq
        %v397 = vshrl.u32 %v396, 7
        %v398 = vsub.s32 1, %v397
        %v399 = vrot.slane %v390, %v398
        %v400 = vlaneseq
        %v401 = vshrl.u32 %v400, 7
        %v402 = vsub.s32 2, %v401
        %v403 = vrot.slane %v390, %v402
        %v404 = vlaneseq
        %v405 = vshrl.u32 %v404, 7
        %v406 = vsub.s32 3, %v405
        %v407 = vrot.slane %v390, %v406
        %v429 = vunpack.c.l.b16 %v369
        %v430 = vunpack.c.l.b16 %v370
        %v431 = vunpack.c.l.b16 %v371
        %v432 = vunpack.c.l.b16 %v372
        %v433 = vunpack.c.l.b16 %v373
        %v434 = vunpack.c.l.b16 %v374
        %v435 = vunpack.c.l.b16 %v375
        %v436 = vunpack.c.l.b16 %v376
        %v437 = vunpack.c.l.b16 %v377
        %v438 = vunpack.c.l.b16 %v378
        %v439 = vunpack.c.l.b16 %v379
        %v440 = vunpack.c.l.b16 %v380
        %v441 = vunpack.c.l.b16 %v381
        %v442 = vunpack.c.l.b16 %v382
        %v443 = vunpack.c.l.b16 %v383
        %v444 = vunpack.c.l.b16 %v384
        %v445 = vunpack.c.l.b16 %v385
        %v446 = vpack.c.b16 %v430, %v429
        %v447 = vpack.c.b16 %v432, %v431
        %v448 = vpack.c.b16 %v434, %v433
        %v449 = vpack.c.b16 %v436, %v435
        %v450 = vpack.c.b16 %v438, %v437
        %v451 = vpack.c.b16 %v440, %v439
        %v452 = vpack.c.b16 %v442, %v441
        %v453 = vpack.c.b16 %v444, %v443
        %v454 = vpack.c.b16 %v445, %v445
        %v459 = vunpack.c.l.b16 %v386
        %v460 = vunpack.c.h.b16 %v386
        %v461 = vunpack.c.l.b16 %v387
        %v462 = vunpack.c.h.b16 %v387
        %v463 = vunpack.c.l.b16 %v388
        %v464 = vunpack.c.h.b16 %v388
        %v465 = vunpack.c.l.b16 %v389
        %v466 = vunpack.c.h.b16 %v389
        %v467 = vpack.c.b16 %v463, %v459
        %v468 = vpack.c.b16 %v464, %v460
        %v469 = vpack.c.b16 %v465, %v461
        %v470 = vpack.c.b16 %v466, %v462
        %vm471 = vcmask 97280
        %v473 = vsel %vm471, %v446, 0
        %v476 = vsel %vm471, %v447, 0
        %v479 = vsel %vm471, %v448, 0
        %v482 = vsel %vm471, %v449, 0
        %v485 = vsel %vm471, %v450, 0
        %v488 = vsel %vm471, %v451, 0
        %v491 = vsel %vm471, %v452, 0
        %v494 = vsel %vm471, %v453, 0
        %v497 = vsel %vm471, %v454, 0
        %vm499 = vcmask 1045504
        %v501 = vsel %vm499, %v467, 0
        %v504 = vsel %vm499, %v468, 0
        %v507 = vsel %vm499, %v469, 0
        %v510 = vsel %vm499, %v470, 0
        %512 = vmatprep.subr.bf16.mxu0 %v504
        %513 = vmatpush1.bf16.msra.mxu0 %v501
        %514 = vmatprep.subr.bf16.mxu0 0
        %515 = vmatpush1.bf16.msra.mxu0 0
        %516 = vmatprep.subr.bf16.mxu0 0
        %517 = vmatpush1.bf16.msra.mxu0 0
        %518 = vmatprep.subr.bf16.mxu0 0
        %519 = vmatpush1.bf16.msra.mxu0 0
        %520 = vmatprep.subr.bf16.mxu0 0
        %521 = vmatpush1.bf16.msra.mxu0 0
        %522 = vmatprep.subr.bf16.mxu0 0
        %523 = vmatpush1.bf16.msra.mxu0 0
        %524 = vmatprep.subr.bf16.mxu0 0
        %525 = vmatpush1.bf16.msra.mxu0 0
        %526 = vmatprep.subr.bf16.mxu0 0
        %527 = vmatpush1.bf16.msra.mxu0 0
        %528 = vmatprep.subr.bf16.mxu0 0
        %529 = vmatpush1.bf16.msra.mxu0 0
        %530 = vmatprep.subr.bf16.mxu0 0
        %531 = vmatpush1.bf16.msra.mxu0 0
        %532 = vmatprep.subr.bf16.mxu0 0
        %533 = vmatpush1.bf16.msra.mxu0 0
        %534 = vmatprep.subr.bf16.mxu0 0
        %535 = vmatpush1.bf16.msra.mxu0 0
        %536 = vmatprep.subr.bf16.mxu0 0
        %537 = vmatpush1.bf16.msra.mxu0 0
        %538 = vmatprep.subr.bf16.mxu0 0
        %539 = vmatpush1.bf16.msra.mxu0 0
        %540 = vmatprep.subr.bf16.mxu0 0
        %541 = vmatpush1.bf16.msra.mxu0 0
        %542 = vmatprep.subr.bf16.mxu0 0
        %543 = vmatpush1.bf16.msra.mxu0 0
        %544 = vmatprep.mubr.bf16.mxu0 0
        %545 = vmatmul.mubr.bf16.gmra.mrb[0].mxu0 %v473
        %v546 = vpop.f32.mrb[0].mxu0
        %v547 = vadd.f32 %v395, %v546
        %v548 = vpop.f32.mrb[0].mxu0
        %v549 = vadd.f32 %v399, %v548
        %v550 = vpop.f32.mrb[0].mxu0
        %v551 = vadd.f32 %v395, %v550
        %v552 = vpop.f32.mrb[0].mxu0
        %v553 = vadd.f32 %v399, %v552
        %554 = vmatprep.mubr.bf16.mxu0 0
        %555 = vmatmul.mubr.bf16.gmra.mrb[0].mxu0 %v476
        %v556 = vpop.f32.mrb[0].mxu0
        %v557 = vadd.f32 %v395, %v556
        %v558 = vpop.f32.mrb[0].mxu0
        %v559 = vadd.f32 %v399, %v558
        %v560 = vpop.f32.mrb[0].mxu0
        %v561 = vadd.f32 %v395, %v560
        %v562 = vpop.f32.mrb[0].mxu0
        %v563 = vadd.f32 %v399, %v562
        %564 = vmatprep.mubr.bf16.mxu0 0
        %565 = vmatmul.mubr.bf16.gmra.mrb[0].mxu0 %v479
        %v566 = vpop.f32.mrb[0].mxu0
        %v567 = vadd.f32 %v395, %v566
        %v568 = vpop.f32.mrb[0].mxu0
        %v569 = vadd.f32 %v399, %v568
        %v570 = vpop.f32.mrb[0].mxu0
        %v571 = vadd.f32 %v395, %v570
        %v572 = vpop.f32.mrb[0].mxu0
        %v573 = vadd.f32 %v399, %v572
        %574 = vmatprep.mubr.bf16.mxu0 0
        %575 = vmatmul.mubr.bf16.gmra.mrb[0].mxu0 %v482
        %v576 = vpop.f32.mrb[0].mxu0
        %v577 = vadd.f32 %v395, %v576
        %v578 = vpop.f32.mrb[0].mxu0
        %v579 = vadd.f32 %v399, %v578
        %v580 = vpop.f32.mrb[0].mxu0
        %v581 = vadd.f32 %v395, %v580
        %v582 = vpop.f32.mrb[0].mxu0
        %v583 = vadd.f32 %v399, %v582
        %584 = vmatprep.mubr.bf16.mxu0 0
        %585 = vmatmul.mubr.bf16.gmra.mrb[0].mxu0 %v485
        %v586 = vpop.f32.mrb[0].mxu0
        %v587 = vadd.f32 %v395, %v586
        %v588 = vpop.f32.mrb[0].mxu0
        %v589 = vadd.f32 %v399, %v588
        %v590 = vpop.f32.mrb[0].mxu0
        %v591 = vadd.f32 %v395, %v590
        %v592 = vpop.f32.mrb[0].mxu0
        %v593 = vadd.f32 %v399, %v592
        %594 = vmatprep.mubr.bf16.mxu0 0
        %595 = vmatmul.mubr.bf16.gmra.mrb[0].mxu0 %v488
        %v596 = vpop.f32.mrb[0].mxu0
        %v597 = vadd.f32 %v395, %v596
        %v598 = vpop.f32.mrb[0].mxu0
        %v599 = vadd.f32 %v399, %v598
        %v600 = vpop.f32.mrb[0].mxu0
        %v601 = vadd.f32 %v395, %v600
        %v602 = vpop.f32.mrb[0].mxu0
        %v603 = vadd.f32 %v399, %v602
        %604 = vmatprep.mubr.bf16.mxu0 0
        %605 = vmatmul.mubr.bf16.gmra.mrb[0].mxu0 %v491
        %v606 = vpop.f32.mrb[0].mxu0
        %v607 = vadd.f32 %v395, %v606
        %v608 = vpop.f32.mrb[0].mxu0
        %v609 = vadd.f32 %v399, %v608
        %v610 = vpop.f32.mrb[0].mxu0
        %v611 = vadd.f32 %v395, %v610
        %v612 = vpop.f32.mrb[0].mxu0
        %v613 = vadd.f32 %v399, %v612
        %614 = vmatprep.mubr.bf16.mxu0 0
        %615 = vmatmul.mubr.bf16.gmra.mrb[0].mxu0 %v494
        %v616 = vpop.f32.mrb[0].mxu0
        %v617 = vadd.f32 %v395, %v616
        %v618 = vpop.f32.mrb[0].mxu0
        %v619 = vadd.f32 %v399, %v618
        %v620 = vpop.f32.mrb[0].mxu0
        %v621 = vadd.f32 %v395, %v620
        %v622 = vpop.f32.mrb[0].mxu0
        %v623 = vadd.f32 %v399, %v622
        %624 = vmatprep.mubr.bf16.mxu0 0
        %625 = vmatmul.mubr.bf16.gmra.mrb[0].mxu0 %v497
        %v626 = vpop.f32.mrb[0].mxu0
        %v627 = vadd.f32 %v395, %v626
        %v628 = vpop.f32.mrb[0].mxu0
        %v629 = vadd.f32 %v399, %v628
        %v630 = vpop.f32.mrb[0].mxu0
        %v631 = vpop.f32.mrb[0].mxu0
        %632 = vdwg.mxu0
        %633 = vmatprep.subr.bf16.mxu0 %v510
        %634 = vmatpush1.bf16.msra.mxu0 %v507
        %635 = vmatprep.subr.bf16.mxu0 0
        %636 = vmatpush1.bf16.msra.mxu0 0
        %637 = vmatprep.subr.bf16.mxu0 0
        %638 = vmatpush1.bf16.msra.mxu0 0
        %639 = vmatprep.subr.bf16.mxu0 0
        %640 = vmatpush1.bf16.msra.mxu0 0
        %641 = vmatprep.subr.bf16.mxu0 0
        %642 = vmatpush1.bf16.msra.mxu0 0
        %643 = vmatprep.subr.bf16.mxu0 0
        %644 = vmatpush1.bf16.msra.mxu0 0
        %645 = vmatprep.subr.bf16.mxu0 0
        %646 = vmatpush1.bf16.msra.mxu0 0
        %647 = vmatprep.subr.bf16.mxu0 0
        %648 = vmatpush1.bf16.msra.mxu0 0
        %649 = vmatprep.subr.bf16.mxu0 0
        %650 = vmatpush1.bf16.msra.mxu0 0
        %651 = vmatprep.subr.bf16.mxu0 0
        %652 = vmatpush1.bf16.msra.mxu0 0
        %653 = vmatprep.subr.bf16.mxu0 0
        %654 = vmatpush1.bf16.msra.mxu0 0
        %655 = vmatprep.subr.bf16.mxu0 0
        %656 = vmatpush1.bf16.msra.mxu0 0
        %657 = vmatprep.subr.bf16.mxu0 0
        %658 = vmatpush1.bf16.msra.mxu0 0
        %659 = vmatprep.subr.bf16.mxu0 0
        %660 = vmatpush1.bf16.msra.mxu0 0
        %661 = vmatprep.subr.bf16.mxu0 0
        %662 = vmatpush1.bf16.msra.mxu0 0
        %663 = vmatprep.subr.bf16.mxu0 0
        %664 = vmatpush1.bf16.msra.mxu0 0
        %665 = vmatprep.mubr.bf16.mxu0 0
        %666 = vmatmul.mubr.bf16.gmra.mrb[0].mxu0 %v473
        %v667 = vpop.f32.mrb[0].mxu0
        %v668 = vadd.f32 %v403, %v667
        %v669 = vpop.f32.mrb[0].mxu0
        %v670 = vadd.f32 %v407, %v669
        %v671 = vpop.f32.mrb[0].mxu0
        %v672 = vadd.f32 %v403, %v671
        %v673 = vpop.f32.mrb[0].mxu0
        %v674 = vadd.f32 %v407, %v673
        %675 = vmatprep.mubr.bf16.mxu0 0
        %676 = vmatmul.mubr.bf16.gmra.mrb[0].mxu0 %v476
        %v677 = vpop.f32.mrb[0].mxu0
        %v678 = vadd.f32 %v403, %v677
        %v679 = vpop.f32.mrb[0].mxu0
        %v680 = vadd.f32 %v407, %v679
        %v681 = vpop.f32.mrb[0].mxu0
        %v682 = vadd.f32 %v403, %v681
        %v683 = vpop.f32.mrb[0].mxu0
        %v684 = vadd.f32 %v407, %v683
        %685 = vmatprep.mubr.bf16.mxu0 0
        %686 = vmatmul.mubr.bf16.gmra.mrb[0].mxu0 %v479
        %v687 = vpop.f32.mrb[0].mxu0
        %v688 = vadd.f32 %v403, %v687
        %v689 = vpop.f32.mrb[0].mxu0
        %v690 = vadd.f32 %v407, %v689
        %v691 = vpop.f32.mrb[0].mxu0
        %v692 = vadd.f32 %v403, %v691
        %v693 = vpop.f32.mrb[0].mxu0
        %v694 = vadd.f32 %v407, %v693
        %695 = vmatprep.mubr.bf16.mxu0 0
        %696 = vmatmul.mubr.bf16.gmra.mrb[0].mxu0 %v482
        %v697 = vpop.f32.mrb[0].mxu0
        %v698 = vadd.f32 %v403, %v697
        %v699 = vpop.f32.mrb[0].mxu0
        %v700 = vadd.f32 %v407, %v699
        %v701 = vpop.f32.mrb[0].mxu0
        %v702 = vadd.f32 %v403, %v701
        %v703 = vpop.f32.mrb[0].mxu0
        %v704 = vadd.f32 %v407, %v703
        %705 = vmatprep.mubr.bf16.mxu0 0
        %706 = vmatmul.mubr.bf16.gmra.mrb[0].mxu0 %v485
        %v707 = vpop.f32.mrb[0].mxu0
        %v708 = vadd.f32 %v403, %v707
        %v709 = vpop.f32.mrb[0].mxu0
        %v710 = vadd.f32 %v407, %v709
        %v711 = vpop.f32.mrb[0].mxu0
        %v712 = vadd.f32 %v403, %v711
        %v713 = vpop.f32.mrb[0].mxu0
        %v714 = vadd.f32 %v407, %v713
        %715 = vmatprep.mubr.bf16.mxu0 0
        %716 = vmatmul.mubr.bf16.gmra.mrb[0].mxu0 %v488
        %v717 = vpop.f32.mrb[0].mxu0
        %v718 = vadd.f32 %v403, %v717
        %v719 = vpop.f32.mrb[0].mxu0
        %v720 = vadd.f32 %v407, %v719
        %v721 = vpop.f32.mrb[0].mxu0
        %v722 = vadd.f32 %v403, %v721
        %v723 = vpop.f32.mrb[0].mxu0
        %v724 = vadd.f32 %v407, %v723
        %725 = vmatprep.mubr.bf16.mxu0 0
        %726 = vmatmul.mubr.bf16.gmra.mrb[0].mxu0 %v491
        %v727 = vpop.f32.mrb[0].mxu0
        %v728 = vadd.f32 %v403, %v727
        %v729 = vpop.f32.mrb[0].mxu0
        %v730 = vadd.f32 %v407, %v729
        %v731 = vpop.f32.mrb[0].mxu0
        %v732 = vadd.f32 %v403, %v731
        %v733 = vpop.f32.mrb[0].mxu0
        %v734 = vadd.f32 %v407, %v733
        %735 = vmatprep.mubr.bf16.mxu0 0
        %736 = vmatmul.mubr.bf16.gmra.mrb[0].mxu0 %v494
        %v737 = vpop.f32.mrb[0].mxu0
        %v738 = vadd.f32 %v403, %v737
        %v739 = vpop.f32.mrb[0].mxu0
        %v740 = vadd.f32 %v407, %v739
        %v741 = vpop.f32.mrb[0].mxu0
        %v742 = vadd.f32 %v403, %v741
        %v743 = vpop.f32.mrb[0].mxu0
        %v744 = vadd.f32 %v407, %v743
        %745 = vmatprep.mubr.bf16.mxu0 0
        %746 = vmatmul.mubr.bf16.gmra.mrb[0].mxu0 %v497
        %v747 = vpop.f32.mrb[0].mxu0
        %v748 = vadd.f32 %v403, %v747
        %v749 = vpop.f32.mrb[0].mxu0
        %v750 = vadd.f32 %v407, %v749
        %v751 = vpop.f32.mrb[0].mxu0
        %v752 = vpop.f32.mrb[0].mxu0
        %753 = vdwg.mxu0
        %v754 = vmax.f32 %v547, 0.0
        %v755 = vmax.f32 %v549, 0.0
        %v756 = vmax.f32 %v668, 0.0
        %v757 = vmax.f32 %v670, 0.0
        %v758 = vmax.f32 %v551, 0.0
        %v759 = vmax.f32 %v553, 0.0
        %v760 = vmax.f32 %v672, 0.0
        %v761 = vmax.f32 %v674, 0.0
        %v762 = vmax.f32 %v557, 0.0
        %v763 = vmax.f32 %v559, 0.0
        %v764 = vmax.f32 %v678, 0.0
        %v765 = vmax.f32 %v680, 0.0
        %v766 = vmax.f32 %v561, 0.0
        %v767 = vmax.f32 %v563, 0.0
        %v768 = vmax.f32 %v682, 0.0
        %v769 = vmax.f32 %v684, 0.0
        %v770 = vmax.f32 %v567, 0.0
        %v771 = vmax.f32 %v569, 0.0
        %v772 = vmax.f32 %v688, 0.0
        %v773 = vmax.f32 %v690, 0.0
        %v774 = vmax.f32 %v571, 0.0
        %v775 = vmax.f32 %v573, 0.0
        %v776 = vmax.f32 %v692, 0.0
        %v777 = vmax.f32 %v694, 0.0
        %v778 = vmax.f32 %v577, 0.0
        %v779 = vmax.f32 %v579, 0.0
        %v780 = vmax.f32 %v698, 0.0
        %v781 = vmax.f32 %v700, 0.0
        %v782 = vmax.f32 %v581, 0.0
        %v783 = vmax.f32 %v583, 0.0
        %v784 = vmax.f32 %v702, 0.0
        %v785 = vmax.f32 %v704, 0.0
        %v786 = vmax.f32 %v587, 0.0
        %v787 = vmax.f32 %v589, 0.0
        %v788 = vmax.f32 %v708, 0.0
        %v789 = vmax.f32 %v710, 0.0
        %v790 = vmax.f32 %v591, 0.0
        %v791 = vmax.f32 %v593, 0.0
        %v792 = vmax.f32 %v712, 0.0
        %v793 = vmax.f32 %v714, 0.0
        %v794 = vmax.f32 %v597, 0.0
        %v795 = vmax.f32 %v599, 0.0
        %v796 = vmax.f32 %v718, 0.0
        %v797 = vmax.f32 %v720, 0.0
        %v798 = vmax.f32 %v601, 0.0
        %v799 = vmax.f32 %v603, 0.0
        %v800 = vmax.f32 %v722, 0.0
        %v801 = vmax.f32 %v724, 0.0
        %v802 = vmax.f32 %v607, 0.0
        %v803 = vmax.f32 %v609, 0.0
        %v804 = vmax.f32 %v728, 0.0
        %v805 = vmax.f32 %v730, 0.0
        %v806 = vmax.f32 %v611, 0.0
        %v807 = vmax.f32 %v613, 0.0
        %v808 = vmax.f32 %v732, 0.0
        %v809 = vmax.f32 %v734, 0.0
        %v810 = vmax.f32 %v617, 0.0
        %v811 = vmax.f32 %v619, 0.0
        %v812 = vmax.f32 %v738, 0.0
        %v813 = vmax.f32 %v740, 0.0
        %v814 = vmax.f32 %v621, 0.0
        %v815 = vmax.f32 %v623, 0.0
        %v816 = vmax.f32 %v742, 0.0
        %v817 = vmax.f32 %v744, 0.0
        %v818 = vmax.f32 %v627, 0.0
        %v819 = vmax.f32 %v629, 0.0
        %v820 = vmax.f32 %v748, 0.0
        %v821 = vmax.f32 %v750, 0.0
        %v822 = vpack.c.bf16 %v758, %v754
        %v823 = vpack.c.bf16 %v759, %v755
        %v824 = vpack.c.bf16 %v760, %v756
        %v825 = vpack.c.bf16 %v761, %v757
        %v826 = vpack.c.bf16 %v766, %v762
        %v827 = vpack.c.bf16 %v767, %v763
        %v828 = vpack.c.bf16 %v768, %v764
        %v829 = vpack.c.bf16 %v769, %v765
        %v830 = vpack.c.bf16 %v774, %v770
        %v831 = vpack.c.bf16 %v775, %v771
        %v832 = vpack.c.bf16 %v776, %v772
        %v833 = vpack.c.bf16 %v777, %v773
        %v834 = vpack.c.bf16 %v782, %v778
        %v835 = vpack.c.bf16 %v783, %v779
        %v836 = vpack.c.bf16 %v784, %v780
        %v837 = vpack.c.bf16 %v785, %v781
        %v838 = vpack.c.bf16 %v790, %v786
        %v839 = vpack.c.bf16 %v791, %v787
        %v840 = vpack.c.bf16 %v792, %v788
        %v841 = vpack.c.bf16 %v793, %v789
        %v842 = vpack.c.bf16 %v798, %v794
        %v843 = vpack.c.bf16 %v799, %v795
        %v844 = vpack.c.bf16 %v800, %v796
        %v845 = vpack.c.bf16 %v801, %v797
        %v846 = vpack.c.bf16 %v806, %v802
        %v847 = vpack.c.bf16 %v807, %v803
        %v848 = vpack.c.bf16 %v808, %v804
        %v849 = vpack.c.bf16 %v809, %v805
        %v850 = vpack.c.bf16 %v814, %v810
        %v851 = vpack.c.bf16 %v815, %v811
        %v852 = vpack.c.bf16 %v816, %v812
        %v853 = vpack.c.bf16 %v817, %v813
        %v854 = vpack.c.bf16 %v818, %v818
        %v855 = vpack.c.bf16 %v819, %v819
        %v856 = vpack.c.bf16 %v820, %v820
        %v857 = vpack.c.bf16 %v821, %v821
        %v858 = vlaneseq
        %v859 = vshrl.u32 %v858, 7
        %v860 = vadd.s32 %v859, 8
        %v861 = vadd.s32 %v859, 16
        %v862 = vadd.s32 %v859, 24
        %v863 = vadd.s32 %v859, 32
        %v864 = vadd.s32 %v859, 40
        %v865 = vadd.s32 %v859, 48
        %v866 = vadd.s32 %v859, 56
        %v867 = vadd.s32 %v859, 64
        %v868 = vadd.s32 %v859, 72
        %v869 = vadd.s32 %v859, 80
        %v870 = vadd.s32 %v859, 88
        %v871 = vadd.s32 %v859, 96
        %v872 = vadd.s32 %v859, 104
        %v873 = vadd.s32 %v859, 112
        %v874 = vadd.s32 %v859, 120
        %v875 = vadd.s32 %v859, 128
        %s876 = smul.u32 %s29, 128
        %s877 = ssub.s32 %s876, 1
        %v878 = vstv %s877
        %v879 = vadd.s32 %v859, %v878
        %v880 = vadd.s32 %v860, %v878
        %v881 = vadd.s32 %v861, %v878
        %v882 = vadd.s32 %v862, %v878
        %v883 = vadd.s32 %v863, %v878
        %v884 = vadd.s32 %v864, %v878
        %v885 = vadd.s32 %v865, %v878
        %v886 = vadd.s32 %v866, %v878
        %v887 = vadd.s32 %v867, %v878
        %v888 = vadd.s32 %v868, %v878
        %v889 = vadd.s32 %v869, %v878
        %v890 = vadd.s32 %v870, %v878
        %v891 = vadd.s32 %v871, %v878
        %v892 = vadd.s32 %v872, %v878
        %v893 = vadd.s32 %v873, %v878
        %v894 = vadd.s32 %v874, %v878
        %v895 = vadd.s32 %v875, %v878
        %vm896 = vcmp.ge.s32.totalorder %v879, 0
        %vm897 = vcmp.ge.s32.totalorder %v880, 0
        %vm898 = vcmp.ge.s32.totalorder %v881, 0
        %vm899 = vcmp.ge.s32.totalorder %v882, 0
        %vm900 = vcmp.ge.s32.totalorder %v883, 0
        %vm901 = vcmp.ge.s32.totalorder %v884, 0
        %vm902 = vcmp.ge.s32.totalorder %v885, 0
        %vm903 = vcmp.ge.s32.totalorder %v886, 0
        %vm904 = vcmp.ge.s32.totalorder %v887, 0
        %vm905 = vcmp.ge.s32.totalorder %v888, 0
        %vm906 = vcmp.ge.s32.totalorder %v889, 0
        %vm907 = vcmp.ge.s32.totalorder %v890, 0
        %vm908 = vcmp.ge.s32.totalorder %v891, 0
        %vm909 = vcmp.ge.s32.totalorder %v892, 0
        %vm910 = vcmp.ge.s32.totalorder %v893, 0
        %vm911 = vcmp.ge.s32.totalorder %v894, 0
        %vm912 = vcmp.ge.s32.totalorder %v895, 0
        %vm913 = vcmp.lt.s32.totalorder %v879, 100
        %vm914 = vcmp.lt.s32.totalorder %v880, 100
        %vm915 = vcmp.lt.s32.totalorder %v881, 100
        %vm916 = vcmp.lt.s32.totalorder %v882, 100
        %vm917 = vcmp.lt.s32.totalorder %v883, 100
        %vm918 = vcmp.lt.s32.totalorder %v884, 100
        %vm919 = vcmp.lt.s32.totalorder %v885, 100
        %vm920 = vcmp.lt.s32.totalorder %v886, 100
        %vm921 = vcmp.lt.s32.totalorder %v887, 100
        %vm922 = vcmp.lt.s32.totalorder %v888, 100
        %vm923 = vcmp.lt.s32.totalorder %v889, 100
        %vm924 = vcmp.lt.s32.totalorder %v890, 100
        %vm925 = vcmp.lt.s32.totalorder %v891, 100
        %vm926 = vcmp.lt.s32.totalorder %v892, 100
        %vm927 = vcmp.lt.s32.totalorder %v893, 100
        %vm928 = vcmp.lt.s32.totalorder %v894, 100
        %vm929 = vcmp.lt.s32.totalorder %v895, 100
        %vm930 = vmand %vm896, %vm913
        %vm931 = vmand %vm897, %vm914
        %vm932 = vmand %vm898, %vm915
        %vm933 = vmand %vm899, %vm916
        %vm934 = vmand %vm900, %vm917
        %vm935 = vmand %vm901, %vm918
        %vm936 = vmand %vm902, %vm919
        %vm937 = vmand %vm903, %vm920
        %vm938 = vmand %vm904, %vm921
        %vm939 = vmand %vm905, %vm922
        %vm940 = vmand %vm906, %vm923
        %vm941 = vmand %vm907, %vm924
        %vm942 = vmand %vm908, %vm925
        %vm943 = vmand %vm909, %vm926
        %vm944 = vmand %vm910, %vm927
        %vm945 = vmand %vm911, %vm928
        %vm946 = vmand %vm912, %vm929
        %v947 = vsel %vm930, 1, 0
        %v948 = vsel %vm931, 1, 0
        %v949 = vsel %vm932, 1, 0
        %v950 = vsel %vm933, 1, 0
        %v951 = vsel %vm934, 1, 0
        %v952 = vsel %vm935, 1, 0
        %v953 = vsel %vm936, 1, 0
        %v954 = vsel %vm937, 1, 0
        %v955 = vsel %vm938, 1, 0
        %v956 = vsel %vm939, 1, 0
        %v957 = vsel %vm940, 1, 0
        %v958 = vsel %vm941, 1, 0
        %v959 = vsel %vm942, 1, 0
        %v960 = vsel %vm943, 1, 0
        %v961 = vsel %vm944, 1, 0
        %v962 = vsel %vm945, 1, 0
        %v963 = vsel %vm946, 1, 0
        %vm964 = vcmp.eq.s32.totalorder %v947, 1
        %vm965 = vcmp.eq.s32.totalorder %v948, 1
        %vm966 = vcmp.eq.s32.totalorder %v949, 1
        %vm967 = vcmp.eq.s32.totalorder %v950, 1
        %vm968 = vcmp.eq.s32.totalorder %v951, 1
        %vm969 = vcmp.eq.s32.totalorder %v952, 1
        %vm970 = vcmp.eq.s32.totalorder %v953, 1
        %vm971 = vcmp.eq.s32.totalorder %v954, 1
        %vm972 = vcmp.eq.s32.totalorder %v955, 1
        %vm973 = vcmp.eq.s32.totalorder %v956, 1
        %vm974 = vcmp.eq.s32.totalorder %v957, 1
        %vm975 = vcmp.eq.s32.totalorder %v958, 1
        %vm976 = vcmp.eq.s32.totalorder %v959, 1
        %vm977 = vcmp.eq.s32.totalorder %v960, 1
        %vm978 = vcmp.eq.s32.totalorder %v961, 1
        %vm979 = vcmp.eq.s32.totalorder %v962, 1
        %vm980 = vcmp.eq.s32.totalorder %v963, 1
        %vm981 = vmpackc.low %vm964, %vm964
        %vm982 = vmpackc.low %vm965, %vm965
        %vm983 = vmpackc.low %vm966, %vm966
        %vm984 = vmpackc.low %vm967, %vm967
        %vm985 = vmpackc.low %vm968, %vm968
        %vm986 = vmpackc.low %vm969, %vm969
        %vm987 = vmpackc.low %vm970, %vm970
        %vm988 = vmpackc.low %vm971, %vm971
        %vm989 = vmpackc.low %vm972, %vm972
        %vm990 = vmpackc.low %vm973, %vm973
        %vm991 = vmpackc.low %vm974, %vm974
        %vm992 = vmpackc.low %vm975, %vm975
        %vm993 = vmpackc.low %vm976, %vm976
        %vm994 = vmpackc.low %vm977, %vm977
        %vm995 = vmpackc.low %vm978, %vm978
        %vm996 = vmpackc.low %vm979, %vm979
        %vm997 = vmpackc.low %vm980, %vm980
        %v998 = vsel %vm981, 65537, 0
        %v999 = vsel %vm982, 65537, 0
        %v1000 = vsel %vm983, 65537, 0
        %v1001 = vsel %vm984, 65537, 0
        %v1002 = vsel %vm985, 65537, 0
        %v1003 = vsel %vm986, 65537, 0
        %v1004 = vsel %vm987, 65537, 0
        %v1005 = vsel %vm988, 65537, 0
        %v1006 = vsel %vm989, 65537, 0
        %v1007 = vsel %vm990, 65537, 0
        %v1008 = vsel %vm991, 65537, 0
        %v1009 = vsel %vm992, 65537, 0
        %v1010 = vsel %vm993, 65537, 0
        %v1011 = vsel %vm994, 65537, 0
        %v1012 = vsel %vm995, 65537, 0
        %v1013 = vsel %vm996, 65537, 0
        %v1014 = vsel %vm997, 65537, 0
        %v1015 = vunpack.c.l.b16 %v998
        %v1016 = vunpack.c.l.b16 %v999
        %v1017 = vunpack.c.l.b16 %v1000
        %v1018 = vunpack.c.l.b16 %v1001
        %v1019 = vunpack.c.l.b16 %v1002
        %v1020 = vunpack.c.l.b16 %v1003
        %v1021 = vunpack.c.l.b16 %v1004
        %v1022 = vunpack.c.l.b16 %v1005
        %v1023 = vunpack.c.l.b16 %v1006
        %v1024 = vunpack.c.l.b16 %v1007
        %v1025 = vunpack.c.l.b16 %v1008
        %v1026 = vunpack.c.l.b16 %v1009
        %v1027 = vunpack.c.l.b16 %v1010
        %v1028 = vunpack.c.l.b16 %v1011
        %v1029 = vunpack.c.l.b16 %v1012
        %v1030 = vunpack.c.l.b16 %v1013
        %v1031 = vunpack.c.l.b16 %v1014
        %v1032 = vpack.c.b16 %v1016, %v1015
        %v1033 = vpack.c.b16 %v1018, %v1017
        %v1034 = vpack.c.b16 %v1020, %v1019
        %v1035 = vpack.c.b16 %v1022, %v1021
        %v1036 = vpack.c.b16 %v1024, %v1023
        %v1037 = vpack.c.b16 %v1026, %v1025
        %v1038 = vpack.c.b16 %v1028, %v1027
        %v1039 = vpack.c.b16 %v1030, %v1029
        %v1040 = vpack.c.b16 %v1031, %v1031
        %vm1041 = vcmp.ne.s16.totalorder %v1032, 0
        %vm1042 = vcmp.ne.s16.totalorder %v1033, 0
        %vm1043 = vcmp.ne.s16.totalorder %v1034, 0
        %vm1044 = vcmp.ne.s16.totalorder %v1035, 0
        %vm1045 = vcmp.ne.s16.totalorder %v1036, 0
        %vm1046 = vcmp.ne.s16.totalorder %v1037, 0
        %vm1047 = vcmp.ne.s16.totalorder %v1038, 0
        %vm1048 = vcmp.ne.s16.totalorder %v1039, 0
        %vm1049 = vcmp.ne.s16.totalorder %v1040, 0
        %v1050 = vsel %vm1041, %v822, 0
        %v1051 = vsel %vm1041, %v823, 0
        %v1052 = vsel %vm1041, %v824, 0
        %v1053 = vsel %vm1041, %v825, 0
        %v1054 = vsel %vm1042, %v826, 0
        %v1055 = vsel %vm1042, %v827, 0
        %v1056 = vsel %vm1042, %v828, 0
        %v1057 = vsel %vm1042, %v829, 0
        %v1058 = vsel %vm1043, %v830, 0
        %v1059 = vsel %vm1043, %v831, 0
        %v1060 = vsel %vm1043, %v832, 0
        %v1061 = vsel %vm1043, %v833, 0
        %v1062 = vsel %vm1044, %v834, 0
        %v1063 = vsel %vm1044, %v835, 0
        %v1064 = vsel %vm1044, %v836, 0
        %v1065 = vsel %vm1044, %v837, 0
        %v1066 = vsel %vm1045, %v838, 0
        %v1067 = vsel %vm1045, %v839, 0
        %v1068 = vsel %vm1045, %v840, 0
        %v1069 = vsel %vm1045, %v841, 0
        %v1070 = vsel %vm1046, %v842, 0
        %v1071 = vsel %vm1046, %v843, 0
        %v1072 = vsel %vm1046, %v844, 0
        %v1073 = vsel %vm1046, %v845, 0
        %v1074 = vsel %vm1047, %v846, 0
        %v1075 = vsel %vm1047, %v847, 0
        %v1076 = vsel %vm1047, %v848, 0
        %v1077 = vsel %vm1047, %v849, 0
        %v1078 = vsel %vm1048, %v850, 0
        %v1079 = vsel %vm1048, %v851, 0
        %v1080 = vsel %vm1048, %v852, 0
        %v1081 = vsel %vm1048, %v853, 0
        %v1082 = vsel %vm1049, %v854, 0
        %v1083 = vsel %vm1049, %v855, 0
        %v1084 = vsel %vm1049, %v856, 0
        %v1085 = vsel %vm1049, %v857, 0
        %v1086 = vld [vmem:[#allocation2] sm:$0xff]
        %v1087 = vld [vmem:[#allocation2 + $0x8] sm:$0xf]
        %v1088 = vld [vmem:[#allocation2 + $0xc] sm:$0xff]
        %v1089 = vld [vmem:[#allocation2 + $0x14] sm:$0xf]
        %v1090 = vld [vmem:[#allocation2 + $0x18] sm:$0xff]
        %v1091 = vld [vmem:[#allocation2 + $0x20] sm:$0xf]
        %v1092 = vld [vmem:[#allocation2 + $0x24] sm:$0xff]
        %v1093 = vld [vmem:[#allocation2 + $0x2c] sm:$0xf]
        %v1094 = vld [vmem:[#allocation2 + $0x30] sm:$0xff]
        %v1095 = vld [vmem:[#allocation2 + $0x38] sm:$0xf]
        %v1096 = vld [vmem:[#allocation2 + $0x3c] sm:$0xff]
        %v1097 = vld [vmem:[#allocation2 + $0x44] sm:$0xf]
        %v1098 = vld [vmem:[#allocation2 + $0x48] sm:$0xff]
        %v1099 = vld [vmem:[#allocation2 + $0x50] sm:$0xf]
        %v1100 = vld [vmem:[#allocation2 + $0x54] sm:$0xff]
        %v1101 = vld [vmem:[#allocation2 + $0x5c] sm:$0xf]
        %v1102 = vld [vmem:[#allocation2 + $0x60] sm:$0xff]
        %v1103 = vld [vmem:[#allocation2 + $0x68] sm:$0xf]
        %v1104 = vld [vmem:[#allocation2 + $0x6c] sm:$0xff]
        %v1105 = vld [vmem:[#allocation2 + $0x74] sm:$0xf]
        %v1106 = vld [vmem:[#allocation2 + $0x78] sm:$0xff]
        %v1107 = vld [vmem:[#allocation2 + $0x80] sm:$0xf]
        %v1108 = vld [vmem:[#allocation2 + $0x84] sm:$0xff]
        %v1109 = vld [vmem:[#allocation2 + $0x8c] sm:$0xf]
        %v1110 = vld [vmem:[#allocation2 + $0x90] sm:$0xff]
        %v1111 = vld [vmem:[#allocation2 + $0x98] sm:$0xf]
        %v1112 = vld [vmem:[#allocation2 + $0x9c] sm:$0xff]
        %v1113 = vld [vmem:[#allocation2 + $0xa4] sm:$0xf]
        %v1114 = vld [vmem:[#allocation2 + $0xa8] sm:$0xff]
        %v1115 = vld [vmem:[#allocation2 + $0xb0] sm:$0xf]
        %v1116 = vld [vmem:[#allocation2 + $0xb4] sm:$0xff]
        %v1117 = vld [vmem:[#allocation2 + $0xbc] sm:$0xf]
        %v1118 = vld [vmem:[#allocation2 + $0xc0] sm:$0xff]
        %v1119 = vld [vmem:[#allocation2 + $0xc8] sm:$0xf]
        %v1120 = vld [vmem:[#allocation2 + $0xcc] sm:$0xff]
        %v1121 = vld [vmem:[#allocation2 + $0xd4] sm:$0xf]
        %v1122 = vld [vmem:[#allocation2 + $0xd8] sm:$0xff]
        %v1123 = vld [vmem:[#allocation2 + $0xe0] sm:$0xf]
        %v1124 = vld [vmem:[#allocation2 + $0xe4] sm:$0xff]
        %v1125 = vld [vmem:[#allocation2 + $0xec] sm:$0xf]
        %v1126 = vld [vmem:[#allocation2 + $0xf0] sm:$0xff]
        %v1127 = vld [vmem:[#allocation2 + $0xf8] sm:$0xf]
        %v1128 = vld [vmem:[#allocation2 + $0xfc] sm:$0xff]
        %v1129 = vld [vmem:[#allocation2 + $0x104] sm:$0xf]
        %v1130 = vld [vmem:[#allocation2 + $0x108] sm:$0xff]
        %v1131 = vld [vmem:[#allocation2 + $0x110] sm:$0xf]
        %v1132 = vld [vmem:[#allocation2 + $0x114] sm:$0xff]
        %v1133 = vld [vmem:[#allocation2 + $0x11c] sm:$0xf]
        %v1134 = vld [vmem:[#allocation2 + $0x120] sm:$0xff]
        %v1135 = vld [vmem:[#allocation2 + $0x128] sm:$0xf]
        %v1136 = vld [vmem:[#allocation2 + $0x12c] sm:$0xff]
        %v1137 = vld [vmem:[#allocation2 + $0x134] sm:$0xf]
        %v1138 = vld [vmem:[#allocation2 + $0x138] sm:$0xff]
        %v1139 = vld [vmem:[#allocation2 + $0x140] sm:$0xf]
        %v1140 = vld [vmem:[#allocation2 + $0x144] sm:$0xff]
        %v1141 = vld [vmem:[#allocation2 + $0x14c] sm:$0xf]
        %v1142 = vld [vmem:[#allocation2 + $0x150] sm:$0xff]
        %v1143 = vld [vmem:[#allocation2 + $0x158] sm:$0xf]
        %v1144 = vld [vmem:[#allocation2 + $0x15c] sm:$0xff]
        %v1145 = vld [vmem:[#allocation2 + $0x164] sm:$0xf]
        %v1146 = vld [vmem:[#allocation2 + $0x168] sm:$0xff]
        %v1147 = vld [vmem:[#allocation2 + $0x170] sm:$0xf]
        %v1148 = vld [vmem:[#allocation2 + $0x174] sm:$0xff]
        %v1149 = vld [vmem:[#allocation2 + $0x17c] sm:$0xf]
        %v1150 = vld [vmem:[#allocation2 + $0x180] sm:$0xff]
        %v1151 = vld [vmem:[#allocation2 + $0x188] sm:$0xf]
        %v1152 = vld [vmem:[#allocation2 + $0x18c] sm:$0xff]
        %v1153 = vld [vmem:[#allocation2 + $0x194] sm:$0xf]
        %v1154 = vld [vmem:[#allocation2 + $0x198] sm:$0xff]
        %v1155 = vld [vmem:[#allocation2 + $0x1a0] sm:$0xf]
        %v1156 = vld [vmem:[#allocation2 + $0x1a4] sm:$0xff]
        %v1157 = vld [vmem:[#allocation2 + $0x1ac] sm:$0xf]
        %v1158 = vld [vmem:[#allocation2 + $0x1b0] sm:$0xff]
        %v1159 = vld [vmem:[#allocation2 + $0x1b8] sm:$0xf]
        %v1160 = vld [vmem:[#allocation2 + $0x1bc] sm:$0xff]
        %v1161 = vld [vmem:[#allocation2 + $0x1c4] sm:$0xf]
        %v1162 = vld [vmem:[#allocation2 + $0x1c8] sm:$0xff]
        %v1163 = vld [vmem:[#allocation2 + $0x1d0] sm:$0xf]
        %v1164 = vld [vmem:[#allocation2 + $0x1d4] sm:$0xff]
        %v1165 = vld [vmem:[#allocation2 + $0x1dc] sm:$0xf]
        %v1166 = vld [vmem:[#allocation2 + $0x1e0] sm:$0xff]
        %v1167 = vld [vmem:[#allocation2 + $0x1e8] sm:$0xf]
        %v1168 = vld [vmem:[#allocation2 + $0x1ec] sm:$0xff]
        %v1169 = vld [vmem:[#allocation2 + $0x1f4] sm:$0xf]
        %v1170 = vld [vmem:[#allocation2 + $0x1f8] sm:$0xff]
        %v1171 = vld [vmem:[#allocation2 + $0x200] sm:$0xf]
        %v1172 = vld [vmem:[#allocation2 + $0x204] sm:$0xff]
        %v1173 = vld [vmem:[#allocation2 + $0x20c] sm:$0xf]
        %v1174 = vld [vmem:[#allocation2 + $0x210] sm:$0xff]
        %v1175 = vld [vmem:[#allocation2 + $0x218] sm:$0xf]
        %v1176 = vld [vmem:[#allocation2 + $0x21c] sm:$0xff]
        %v1177 = vld [vmem:[#allocation2 + $0x224] sm:$0xf]
        %v1178 = vld [vmem:[#allocation2 + $0x228] sm:$0xff]
        %v1179 = vld [vmem:[#allocation2 + $0x230] sm:$0xf]
        %v1180 = vld [vmem:[#allocation2 + $0x234] sm:$0xff]
        %v1181 = vld [vmem:[#allocation2 + $0x23c] sm:$0xf]
        %v1182 = vld [vmem:[#allocation2 + $0x240] sm:$0xff]
        %v1183 = vld [vmem:[#allocation2 + $0x248] sm:$0xf]
        %v1184 = vld [vmem:[#allocation2 + $0x24c] sm:$0xff]
        %v1185 = vld [vmem:[#allocation2 + $0x254] sm:$0xf]
        %v1186 = vld [vmem:[#allocation2 + $0x258] sm:$0xff]
        %v1187 = vld [vmem:[#allocation2 + $0x260] sm:$0xf]
        %v1188 = vld [vmem:[#allocation2 + $0x264] sm:$0xff]
        %v1189 = vld [vmem:[#allocation2 + $0x26c] sm:$0xf]
        %v1190 = vld [vmem:[#allocation2 + $0x270] sm:$0xff]
        %v1191 = vld [vmem:[#allocation2 + $0x278] sm:$0xf]
        %v1192 = vld [vmem:[#allocation2 + $0x27c] sm:$0xff]
        %v1193 = vld [vmem:[#allocation2 + $0x284] sm:$0xf]
        %v1194 = vld [vmem:[#allocation2 + $0x288] sm:$0xff]
        %v1195 = vld [vmem:[#allocation2 + $0x290] sm:$0xf]
        %v1196 = vld [vmem:[#allocation2 + $0x294] sm:$0xff]
        %v1197 = vld [vmem:[#allocation2 + $0x29c] sm:$0xf]
        %v1198 = vld [vmem:[#allocation2 + $0x2a0] sm:$0xff]
        %v1199 = vld [vmem:[#allocation2 + $0x2a8] sm:$0xf]
        %v1200 = vld [vmem:[#allocation2 + $0x2ac] sm:$0xff]
        %v1201 = vld [vmem:[#allocation2 + $0x2b4] sm:$0xf]
        %v1202 = vld [vmem:[#allocation2 + $0x2b8] sm:$0xff]
        %v1203 = vld [vmem:[#allocation2 + $0x2c0] sm:$0xf]
        %v1204 = vld [vmem:[#allocation2 + $0x2c4] sm:$0xff]
        %v1205 = vld [vmem:[#allocation2 + $0x2cc] sm:$0xf]
        %v1206 = vld [vmem:[#allocation2 + $0x2d0] sm:$0xff]
        %v1207 = vld [vmem:[#allocation2 + $0x2d8] sm:$0xf]
        %v1208 = vld [vmem:[#allocation2 + $0x2dc] sm:$0xff]
        %v1209 = vld [vmem:[#allocation2 + $0x2e4] sm:$0xf]
        %v1210 = vld [vmem:[#allocation2 + $0x2e8] sm:$0xff]
        %v1211 = vld [vmem:[#allocation2 + $0x2f0] sm:$0xf]
        %v1212 = vld [vmem:[#allocation2 + $0x2f4] sm:$0xff]
        %v1213 = vld [vmem:[#allocation2 + $0x2fc] sm:$0xf]
        %v1342 = vunpack.c.l.b16 %v1086
        %v1343 = vunpack.c.h.b16 %v1086
        %v1344 = vunpack.c.l.b16 %v1087
        %v1345 = vunpack.c.l.b16 %v1088
        %v1346 = vunpack.c.h.b16 %v1088
        %v1347 = vunpack.c.l.b16 %v1089
        %v1348 = vunpack.c.l.b16 %v1090
        %v1349 = vunpack.c.h.b16 %v1090
        %v1350 = vunpack.c.l.b16 %v1091
        %v1351 = vunpack.c.l.b16 %v1092
        %v1352 = vunpack.c.h.b16 %v1092
        %v1353 = vunpack.c.l.b16 %v1093
        %v1354 = vunpack.c.l.b16 %v1094
        %v1355 = vunpack.c.h.b16 %v1094
        %v1356 = vunpack.c.l.b16 %v1095
        %v1357 = vunpack.c.l.b16 %v1096
        %v1358 = vunpack.c.h.b16 %v1096
        %v1359 = vunpack.c.l.b16 %v1097
        %v1360 = vunpack.c.l.b16 %v1098
        %v1361 = vunpack.c.h.b16 %v1098
        %v1362 = vunpack.c.l.b16 %v1099
        %v1363 = vunpack.c.l.b16 %v1100
        %v1364 = vunpack.c.h.b16 %v1100
        %v1365 = vunpack.c.l.b16 %v1101
        %v1366 = vunpack.c.l.b16 %v1102
        %v1367 = vunpack.c.h.b16 %v1102
        %v1368 = vunpack.c.l.b16 %v1103
        %v1369 = vunpack.c.l.b16 %v1104
        %v1370 = vunpack.c.h.b16 %v1104
        %v1371 = vunpack.c.l.b16 %v1105
        %v1372 = vunpack.c.l.b16 %v1106
        %v1373 = vunpack.c.h.b16 %v1106
        %v1374 = vunpack.c.l.b16 %v1107
        %v1375 = vunpack.c.l.b16 %v1108
        %v1376 = vunpack.c.h.b16 %v1108
        %v1377 = vunpack.c.l.b16 %v1109
        %v1378 = vunpack.c.l.b16 %v1110
        %v1379 = vunpack.c.h.b16 %v1110
        %v1380 = vunpack.c.l.b16 %v1111
        %v1381 = vunpack.c.l.b16 %v1112
        %v1382 = vunpack.c.h.b16 %v1112
        %v1383 = vunpack.c.l.b16 %v1113
        %v1384 = vunpack.c.l.b16 %v1114
        %v1385 = vunpack.c.h.b16 %v1114
        %v1386 = vunpack.c.l.b16 %v1115
        %v1387 = vunpack.c.l.b16 %v1116
        %v1388 = vunpack.c.h.b16 %v1116
        %v1389 = vunpack.c.l.b16 %v1117
        %v1390 = vunpack.c.l.b16 %v1118
        %v1391 = vunpack.c.h.b16 %v1118
        %v1392 = vunpack.c.l.b16 %v1119
        %v1393 = vunpack.c.l.b16 %v1120
        %v1394 = vunpack.c.h.b16 %v1120
        %v1395 = vunpack.c.l.b16 %v1121
        %v1396 = vunpack.c.l.b16 %v1122
        %v1397 = vunpack.c.h.b16 %v1122
        %v1398 = vunpack.c.l.b16 %v1123
        %v1399 = vunpack.c.l.b16 %v1124
        %v1400 = vunpack.c.h.b16 %v1124
        %v1401 = vunpack.c.l.b16 %v1125
        %v1402 = vunpack.c.l.b16 %v1126
        %v1403 = vunpack.c.h.b16 %v1126
        %v1404 = vunpack.c.l.b16 %v1127
        %v1405 = vunpack.c.l.b16 %v1128
        %v1406 = vunpack.c.h.b16 %v1128
        %v1407 = vunpack.c.l.b16 %v1129
        %v1408 = vunpack.c.l.b16 %v1130
        %v1409 = vunpack.c.h.b16 %v1130
        %v1410 = vunpack.c.l.b16 %v1131
        %v1411 = vunpack.c.l.b16 %v1132
        %v1412 = vunpack.c.h.b16 %v1132
        %v1413 = vunpack.c.l.b16 %v1133
        %v1414 = vunpack.c.l.b16 %v1134
        %v1415 = vunpack.c.h.b16 %v1134
        %v1416 = vunpack.c.l.b16 %v1135
        %v1417 = vunpack.c.l.b16 %v1136
        %v1418 = vunpack.c.h.b16 %v1136
        %v1419 = vunpack.c.l.b16 %v1137
        %v1420 = vunpack.c.l.b16 %v1138
        %v1421 = vunpack.c.h.b16 %v1138
        %v1422 = vunpack.c.l.b16 %v1139
        %v1423 = vunpack.c.l.b16 %v1140
        %v1424 = vunpack.c.h.b16 %v1140
        %v1425 = vunpack.c.l.b16 %v1141
        %v1426 = vunpack.c.l.b16 %v1142
        %v1427 = vunpack.c.h.b16 %v1142
        %v1428 = vunpack.c.l.b16 %v1143
        %v1429 = vunpack.c.l.b16 %v1144
        %v1430 = vunpack.c.h.b16 %v1144
        %v1431 = vunpack.c.l.b16 %v1145
        %v1432 = vunpack.c.l.b16 %v1146
        %v1433 = vunpack.c.h.b16 %v1146
        %v1434 = vunpack.c.l.b16 %v1147
        %v1435 = vunpack.c.l.b16 %v1148
        %v1436 = vunpack.c.h.b16 %v1148
        %v1437 = vunpack.c.l.b16 %v1149
        %v1438 = vunpack.c.l.b16 %v1150
        %v1439 = vunpack.c.h.b16 %v1150
        %v1440 = vunpack.c.l.b16 %v1151
        %v1441 = vunpack.c.l.b16 %v1152
        %v1442 = vunpack.c.h.b16 %v1152
        %v1443 = vunpack.c.l.b16 %v1153
        %v1444 = vunpack.c.l.b16 %v1154
        %v1445 = vunpack.c.h.b16 %v1154
        %v1446 = vunpack.c.l.b16 %v1155
        %v1447 = vunpack.c.l.b16 %v1156
        %v1448 = vunpack.c.h.b16 %v1156
        %v1449 = vunpack.c.l.b16 %v1157
        %v1450 = vunpack.c.l.b16 %v1158
        %v1451 = vunpack.c.h.b16 %v1158
        %v1452 = vunpack.c.l.b16 %v1159
        %v1453 = vunpack.c.l.b16 %v1160
        %v1454 = vunpack.c.h.b16 %v1160
        %v1455 = vunpack.c.l.b16 %v1161
        %v1456 = vunpack.c.l.b16 %v1162
        %v1457 = vunpack.c.h.b16 %v1162
        %v1458 = vunpack.c.l.b16 %v1163
        %v1459 = vunpack.c.l.b16 %v1164
        %v1460 = vunpack.c.h.b16 %v1164
        %v1461 = vunpack.c.l.b16 %v1165
        %v1462 = vunpack.c.l.b16 %v1166
        %v1463 = vunpack.c.h.b16 %v1166
        %v1464 = vunpack.c.l.b16 %v1167
        %v1465 = vunpack.c.l.b16 %v1168
        %v1466 = vunpack.c.h.b16 %v1168
        %v1467 = vunpack.c.l.b16 %v1169
        %v1468 = vunpack.c.l.b16 %v1170
        %v1469 = vunpack.c.h.b16 %v1170
        %v1470 = vunpack.c.l.b16 %v1171
        %v1471 = vunpack.c.l.b16 %v1172
        %v1472 = vunpack.c.h.b16 %v1172
        %v1473 = vunpack.c.l.b16 %v1173
        %v1474 = vunpack.c.l.b16 %v1174
        %v1475 = vunpack.c.h.b16 %v1174
        %v1476 = vunpack.c.l.b16 %v1175
        %v1477 = vunpack.c.l.b16 %v1176
        %v1478 = vunpack.c.h.b16 %v1176
        %v1479 = vunpack.c.l.b16 %v1177
        %v1480 = vunpack.c.l.b16 %v1178
        %v1481 = vunpack.c.h.b16 %v1178
        %v1482 = vunpack.c.l.b16 %v1179
        %v1483 = vunpack.c.l.b16 %v1180
        %v1484 = vunpack.c.h.b16 %v1180
        %v1485 = vunpack.c.l.b16 %v1181
        %v1486 = vunpack.c.l.b16 %v1182
        %v1487 = vunpack.c.h.b16 %v1182
        %v1488 = vunpack.c.l.b16 %v1183
        %v1489 = vunpack.c.l.b16 %v1184
        %v1490 = vunpack.c.h.b16 %v1184
        %v1491 = vunpack.c.l.b16 %v1185
        %v1492 = vunpack.c.l.b16 %v1186
        %v1493 = vunpack.c.h.b16 %v1186
        %v1494 = vunpack.c.l.b16 %v1187
        %v1495 = vunpack.c.l.b16 %v1188
        %v1496 = vunpack.c.h.b16 %v1188
        %v1497 = vunpack.c.l.b16 %v1189
        %v1498 = vunpack.c.l.b16 %v1190
        %v1499 = vunpack.c.h.b16 %v1190
        %v1500 = vunpack.c.l.b16 %v1191
        %v1501 = vunpack.c.l.b16 %v1192
        %v1502 = vunpack.c.h.b16 %v1192
        %v1503 = vunpack.c.l.b16 %v1193
        %v1504 = vunpack.c.l.b16 %v1194
        %v1505 = vunpack.c.h.b16 %v1194
        %v1506 = vunpack.c.l.b16 %v1195
        %v1507 = vunpack.c.l.b16 %v1196
        %v1508 = vunpack.c.h.b16 %v1196
        %v1509 = vunpack.c.l.b16 %v1197
        %v1510 = vunpack.c.l.b16 %v1198
        %v1511 = vunpack.c.h.b16 %v1198
        %v1512 = vunpack.c.l.b16 %v1199
        %v1513 = vunpack.c.l.b16 %v1200
        %v1514 = vunpack.c.h.b16 %v1200
        %v1515 = vunpack.c.l.b16 %v1201
        %v1516 = vunpack.c.l.b16 %v1202
        %v1517 = vunpack.c.h.b16 %v1202
        %v1518 = vunpack.c.l.b16 %v1203
        %v1519 = vunpack.c.l.b16 %v1204
        %v1520 = vunpack.c.h.b16 %v1204
        %v1521 = vunpack.c.l.b16 %v1205
        %v1522 = vunpack.c.l.b16 %v1206
        %v1523 = vunpack.c.h.b16 %v1206
        %v1524 = vunpack.c.l.b16 %v1207
        %v1525 = vunpack.c.l.b16 %v1208
        %v1526 = vunpack.c.h.b16 %v1208
        %v1527 = vunpack.c.l.b16 %v1209
        %v1528 = vunpack.c.l.b16 %v1210
        %v1529 = vunpack.c.h.b16 %v1210
        %v1530 = vunpack.c.l.b16 %v1211
        %v1531 = vunpack.c.l.b16 %v1212
        %v1532 = vunpack.c.h.b16 %v1212
        %v1533 = vunpack.c.l.b16 %v1213
        %v1534 = vpack.c.b16 %v1345, %v1342
        %v1535 = vpack.c.b16 %v1346, %v1343
        %v1536 = vpack.c.b16 %v1347, %v1344
        %v1537 = vpack.c.b16 %v1351, %v1348
        %v1538 = vpack.c.b16 %v1352, %v1349
        %v1539 = vpack.c.b16 %v1353, %v1350
        %v1540 = vpack.c.b16 %v1357, %v1354
        %v1541 = vpack.c.b16 %v1358, %v1355
        %v1542 = vpack.c.b16 %v1359, %v1356
        %v1543 = vpack.c.b16 %v1363, %v1360
        %v1544 = vpack.c.b16 %v1364, %v1361
        %v1545 = vpack.c.b16 %v1365, %v1362
        %v1546 = vpack.c.b16 %v1369, %v1366
        %v1547 = vpack.c.b16 %v1370, %v1367
        %v1548 = vpack.c.b16 %v1371, %v1368
        %v1549 = vpack.c.b16 %v1375, %v1372
        %v1550 = vpack.c.b16 %v1376, %v1373
        %v1551 = vpack.c.b16 %v1377, %v1374
        %v1552 = vpack.c.b16 %v1381, %v1378
        %v1553 = vpack.c.b16 %v1382, %v1379
        %v1554 = vpack.c.b16 %v1383, %v1380
        %v1555 = vpack.c.b16 %v1387, %v1384
        %v1556 = vpack.c.b16 %v1388, %v1385
        %v1557 = vpack.c.b16 %v1389, %v1386
        %v1558 = vpack.c.b16 %v1393, %v1390
        %v1559 = vpack.c.b16 %v1394, %v1391
        %v1560 = vpack.c.b16 %v1395, %v1392
        %v1561 = vpack.c.b16 %v1399, %v1396
        %v1562 = vpack.c.b16 %v1400, %v1397
        %v1563 = vpack.c.b16 %v1401, %v1398
        %v1564 = vpack.c.b16 %v1405, %v1402
        %v1565 = vpack.c.b16 %v1406, %v1403
        %v1566 = vpack.c.b16 %v1407, %v1404
        %v1567 = vpack.c.b16 %v1411, %v1408
        %v1568 = vpack.c.b16 %v1412, %v1409
        %v1569 = vpack.c.b16 %v1413, %v1410
        %v1570 = vpack.c.b16 %v1417, %v1414
        %v1571 = vpack.c.b16 %v1418, %v1415
        %v1572 = vpack.c.b16 %v1419, %v1416
        %v1573 = vpack.c.b16 %v1423, %v1420
        %v1574 = vpack.c.b16 %v1424, %v1421
        %v1575 = vpack.c.b16 %v1425, %v1422
        %v1576 = vpack.c.b16 %v1429, %v1426
        %v1577 = vpack.c.b16 %v1430, %v1427
        %v1578 = vpack.c.b16 %v1431, %v1428
        %v1579 = vpack.c.b16 %v1435, %v1432
        %v1580 = vpack.c.b16 %v1436, %v1433
        %v1581 = vpack.c.b16 %v1437, %v1434
        %v1582 = vpack.c.b16 %v1441, %v1438
        %v1583 = vpack.c.b16 %v1442, %v1439
        %v1584 = vpack.c.b16 %v1443, %v1440
        %v1585 = vpack.c.b16 %v1447, %v1444
        %v1586 = vpack.c.b16 %v1448, %v1445
        %v1587 = vpack.c.b16 %v1449, %v1446
        %v1588 = vpack.c.b16 %v1453, %v1450
        %v1589 = vpack.c.b16 %v1454, %v1451
        %v1590 = vpack.c.b16 %v1455, %v1452
        %v1591 = vpack.c.b16 %v1459, %v1456
        %v1592 = vpack.c.b16 %v1460, %v1457
        %v1593 = vpack.c.b16 %v1461, %v1458
        %v1594 = vpack.c.b16 %v1465, %v1462
        %v1595 = vpack.c.b16 %v1466, %v1463
        %v1596 = vpack.c.b16 %v1467, %v1464
        %v1597 = vpack.c.b16 %v1471, %v1468
        %v1598 = vpack.c.b16 %v1472, %v1469
        %v1599 = vpack.c.b16 %v1473, %v1470
        %v1600 = vpack.c.b16 %v1477, %v1474
        %v1601 = vpack.c.b16 %v1478, %v1475
        %v1602 = vpack.c.b16 %v1479, %v1476
        %v1603 = vpack.c.b16 %v1483, %v1480
        %v1604 = vpack.c.b16 %v1484, %v1481
        %v1605 = vpack.c.b16 %v1485, %v1482
        %v1606 = vpack.c.b16 %v1489, %v1486
        %v1607 = vpack.c.b16 %v1490, %v1487
        %v1608 = vpack.c.b16 %v1491, %v1488
        %v1609 = vpack.c.b16 %v1495, %v1492
        %v1610 = vpack.c.b16 %v1496, %v1493
        %v1611 = vpack.c.b16 %v1497, %v1494
        %v1612 = vpack.c.b16 %v1501, %v1498
        %v1613 = vpack.c.b16 %v1502, %v1499
        %v1614 = vpack.c.b16 %v1503, %v1500
        %v1615 = vpack.c.b16 %v1507, %v1504
        %v1616 = vpack.c.b16 %v1508, %v1505
        %v1617 = vpack.c.b16 %v1509, %v1506
        %v1618 = vpack.c.b16 %v1513, %v1510
        %v1619 = vpack.c.b16 %v1514, %v1511
        %v1620 = vpack.c.b16 %v1515, %v1512
        %v1621 = vpack.c.b16 %v1519, %v1516
        %v1622 = vpack.c.b16 %v1520, %v1517
        %v1623 = vpack.c.b16 %v1521, %v1518
        %v1624 = vpack.c.b16 %v1525, %v1522
        %v1625 = vpack.c.b16 %v1526, %v1523
        %v1626 = vpack.c.b16 %v1527, %v1524
        %v1627 = vpack.c.b16 %v1531, %v1528
        %v1628 = vpack.c.b16 %v1532, %v1529
        %v1629 = vpack.c.b16 %v1533, %v1530
        %1726 = vmatprep.subr.bf16.mxu0 %v1535
        %1727 = vmatpush1.bf16.msra.mxu0 %v1534
        %1728 = vmatprep.subr.bf16.mxu0 %v1538
        %1729 = vmatpush1.bf16.msra.mxu0 %v1537
        %1730 = vmatprep.subr.bf16.mxu0 %v1541
        %1731 = vmatpush1.bf16.msra.mxu0 %v1540
        %1732 = vmatprep.subr.bf16.mxu0 %v1544
        %1733 = vmatpush1.bf16.msra.mxu0 %v1543
        %1734 = vmatprep.subr.bf16.mxu0 %v1547
        %1735 = vmatpush1.bf16.msra.mxu0 %v1546
        %1736 = vmatprep.subr.bf16.mxu0 %v1550
        %1737 = vmatpush1.bf16.msra.mxu0 %v1549
        %1738 = vmatprep.subr.bf16.mxu0 %v1553
        %1739 = vmatpush1.bf16.msra.mxu0 %v1552
        %1740 = vmatprep.subr.bf16.mxu0 %v1556
        %1741 = vmatpush1.bf16.msra.mxu0 %v1555
        %1742 = vmatprep.subr.bf16.mxu0 %v1559
        %1743 = vmatpush1.bf16.msra.mxu0 %v1558
        %1744 = vmatprep.subr.bf16.mxu0 %v1562
        %1745 = vmatpush1.bf16.msra.mxu0 %v1561
        %1746 = vmatprep.subr.bf16.mxu0 %v1565
        %1747 = vmatpush1.bf16.msra.mxu0 %v1564
        %1748 = vmatprep.subr.bf16.mxu0 %v1568
        %1749 = vmatpush1.bf16.msra.mxu0 %v1567
        %1750 = vmatprep.subr.bf16.mxu0 %v1571
        %1751 = vmatpush1.bf16.msra.mxu0 %v1570
        %1752 = vmatprep.subr.bf16.mxu0 %v1574
        %1753 = vmatpush1.bf16.msra.mxu0 %v1573
        %1754 = vmatprep.subr.bf16.mxu0 %v1577
        %1755 = vmatpush1.bf16.msra.mxu0 %v1576
        %1756 = vmatprep.subr.bf16.mxu0 %v1580
        %1757 = vmatpush1.bf16.msra.mxu0 %v1579
        %1758 = vmatprep.mubr.bf16.mxu0 %v1051
        %1759 = vmatmul.mubr.bf16.gmra.mrb[0].mxu0 %v1050
        %v1760 = vpop.f32.mrb[0].mxu0
        %v1761 = vadd.f32 0.0, %v1760
        %v1762 = vpop.f32.mrb[0].mxu0
        %v1763 = vadd.f32 0.0, %v1762
        %v1764 = vpop.f32.mrb[0].mxu0
        %v1765 = vadd.f32 0.0, %v1764
        %v1766 = vpop.f32.mrb[0].mxu0
        %v1767 = vadd.f32 0.0, %v1766
        %1768 = vmatprep.mubr.bf16.mxu0 %v1055
        %1769 = vmatmul.mubr.bf16.gmra.mrb[0].mxu0 %v1054
        %v1770 = vpop.f32.mrb[0].mxu0
        %v1771 = vadd.f32 0.0, %v1770
        %v1772 = vpop.f32.mrb[0].mxu0
        %v1773 = vadd.f32 0.0, %v1772
        %v1774 = vpop.f32.mrb[0].mxu0
        %v1775 = vadd.f32 0.0, %v1774
        %v1776 = vpop.f32.mrb[0].mxu0
        %v1777 = vadd.f32 0.0, %v1776
        %1778 = vmatprep.mubr.bf16.mxu0 %v1059
        %1779 = vmatmul.mubr.bf16.gmra.mrb[0].mxu0 %v1058
        %v1780 = vpop.f32.mrb[0].mxu0
        %v1781 = vadd.f32 0.0, %v1780
        %v1782 = vpop.f32.mrb[0].mxu0
        %v1783 = vadd.f32 0.0, %v1782
        %v1784 = vpop.f32.mrb[0].mxu0
        %v1785 = vadd.f32 0.0, %v1784
        %v1786 = vpop.f32.mrb[0].mxu0
        %v1787 = vadd.f32 0.0, %v1786
        %1788 = vmatprep.mubr.bf16.mxu0 %v1063
        %1789 = vmatmul.mubr.bf16.gmra.mrb[0].mxu0 %v1062
        %v1790 = vpop.f32.mrb[0].mxu0
        %v1791 = vadd.f32 0.0, %v1790
        %v1792 = vpop.f32.mrb[0].mxu0
        %v1793 = vadd.f32 0.0, %v1792
        %v1794 = vpop.f32.mrb[0].mxu0
        %v1795 = vadd.f32 0.0, %v1794
        %v1796 = vpop.f32.mrb[0].mxu0
        %v1797 = vadd.f32 0.0, %v1796
        %1798 = vmatprep.mubr.bf16.mxu0 %v1067
        %1799 = vmatmul.mubr.bf16.gmra.mrb[0].mxu0 %v1066
        %v1800 = vpop.f32.mrb[0].mxu0
        %v1801 = vadd.f32 0.0, %v1800
        %v1802 = vpop.f32.mrb[0].mxu0
        %v1803 = vadd.f32 0.0, %v1802
        %v1804 = vpop.f32.mrb[0].mxu0
        %v1805 = vadd.f32 0.0, %v1804
        %v1806 = vpop.f32.mrb[0].mxu0
        %v1807 = vadd.f32 0.0, %v1806
        %1808 = vmatprep.mubr.bf16.mxu0 %v1071
        %1809 = vmatmul.mubr.bf16.gmra.mrb[0].mxu0 %v1070
        %v1810 = vpop.f32.mrb[0].mxu0
        %v1811 = vadd.f32 0.0, %v1810
        %v1812 = vpop.f32.mrb[0].mxu0
        %v1813 = vadd.f32 0.0, %v1812
        %v1814 = vpop.f32.mrb[0].mxu0
        %v1815 = vadd.f32 0.0, %v1814
        %v1816 = vpop.f32.mrb[0].mxu0
        %v1817 = vadd.f32 0.0, %v1816
        %1818 = vmatprep.mubr.bf16.mxu0 %v1075
        %1819 = vmatmul.mubr.bf16.gmra.mrb[0].mxu0 %v1074
        %v1820 = vpop.f32.mrb[0].mxu0
        %v1821 = vadd.f32 0.0, %v1820
        %v1822 = vpop.f32.mrb[0].mxu0
        %v1823 = vadd.f32 0.0, %v1822
        %v1824 = vpop.f32.mrb[0].mxu0
        %v1825 = vadd.f32 0.0, %v1824
        %v1826 = vpop.f32.mrb[0].mxu0
        %v1827 = vadd.f32 0.0, %v1826
        %1828 = vmatprep.mubr.bf16.mxu0 %v1079
        %1829 = vmatmul.mubr.bf16.gmra.mrb[0].mxu0 %v1078
        %v1830 = vpop.f32.mrb[0].mxu0
        %v1831 = vadd.f32 0.0, %v1830
        %v1832 = vpop.f32.mrb[0].mxu0
        %v1833 = vadd.f32 0.0, %v1832
        %v1834 = vpop.f32.mrb[0].mxu0
        %v1835 = vadd.f32 0.0, %v1834
        %v1836 = vpop.f32.mrb[0].mxu0
        %v1837 = vadd.f32 0.0, %v1836
        %1838 = vmatprep.mubr.bf16.mxu0 %v1083
        %1839 = vmatmul.mubr.bf16.gmra.mrb[0].mxu0 %v1082
        %v1840 = vpop.f32.mrb[0].mxu0
        %v1841 = vpop.f32.mrb[0].mxu0
        %v1842 = vadd.f32 0.0, %v1841
        %v1843 = vpop.f32.mrb[0].mxu0
        %v1844 = vpop.f32.mrb[0].mxu0
        %1845 = vdwg.mxu0
        %1846 = vmatprep.subr.bf16.mxu0 %v1583
        %1847 = vmatpush1.bf16.msra.mxu0 %v1582
        %1848 = vmatprep.subr.bf16.mxu0 %v1586
        %1849 = vmatpush1.bf16.msra.mxu0 %v1585
        %1850 = vmatprep.subr.bf16.mxu0 %v1589
        %1851 = vmatpush1.bf16.msra.mxu0 %v1588
        %1852 = vmatprep.subr.bf16.mxu0 %v1592
        %1853 = vmatpush1.bf16.msra.mxu0 %v1591
        %1854 = vmatprep.subr.bf16.mxu0 %v1595
        %1855 = vmatpush1.bf16.msra.mxu0 %v1594
        %1856 = vmatprep.subr.bf16.mxu0 %v1598
        %1857 = vmatpush1.bf16.msra.mxu0 %v1597
        %1858 = vmatprep.subr.bf16.mxu0 %v1601
        %1859 = vmatpush1.bf16.msra.mxu0 %v1600
        %1860 = vmatprep.subr.bf16.mxu0 %v1604
        %1861 = vmatpush1.bf16.msra.mxu0 %v1603
        %1862 = vmatprep.subr.bf16.mxu0 %v1607
        %1863 = vmatpush1.bf16.msra.mxu0 %v1606
        %1864 = vmatprep.subr.bf16.mxu0 %v1610
        %1865 = vmatpush1.bf16.msra.mxu0 %v1609
        %1866 = vmatprep.subr.bf16.mxu0 %v1613
        %1867 = vmatpush1.bf16.msra.mxu0 %v1612
        %1868 = vmatprep.subr.bf16.mxu0 %v1616
        %1869 = vmatpush1.bf16.msra.mxu0 %v1615
        %1870 = vmatprep.subr.bf16.mxu0 %v1619
        %1871 = vmatpush1.bf16.msra.mxu0 %v1618
        %1872 = vmatprep.subr.bf16.mxu0 %v1622
        %1873 = vmatpush1.bf16.msra.mxu0 %v1621
        %1874 = vmatprep.subr.bf16.mxu0 %v1625
        %1875 = vmatpush1.bf16.msra.mxu0 %v1624
        %1876 = vmatprep.subr.bf16.mxu0 %v1628
        %1877 = vmatpush1.bf16.msra.mxu0 %v1627
        %1878 = vmatprep.mubr.bf16.mxu0 %v1053
        %1879 = vmatmul.mubr.bf16.gmra.mrb[0].mxu0 %v1052
        %v1880 = vpop.f32.mrb[0].mxu0
        %v1881 = vadd.f32 %v1761, %v1880
        %v1882 = vpop.f32.mrb[0].mxu0
        %v1883 = vadd.f32 %v1763, %v1882
        %v1884 = vpop.f32.mrb[0].mxu0
        %v1885 = vadd.f32 %v1765, %v1884
        %v1886 = vpop.f32.mrb[0].mxu0
        %v1887 = vadd.f32 %v1767, %v1886
        %1888 = vmatprep.mubr.bf16.mxu0 %v1057
        %1889 = vmatmul.mubr.bf16.gmra.mrb[0].mxu0 %v1056
        %v1890 = vpop.f32.mrb[0].mxu0
        %v1891 = vadd.f32 %v1771, %v1890
        %v1892 = vpop.f32.mrb[0].mxu0
        %v1893 = vadd.f32 %v1773, %v1892
        %v1894 = vpop.f32.mrb[0].mxu0
        %v1895 = vadd.f32 %v1775, %v1894
        %v1896 = vpop.f32.mrb[0].mxu0
        %v1897 = vadd.f32 %v1777, %v1896
        %1898 = vmatprep.mubr.bf16.mxu0 %v1061
        %1899 = vmatmul.mubr.bf16.gmra.mrb[0].mxu0 %v1060
        %v1900 = vpop.f32.mrb[0].mxu0
        %v1901 = vadd.f32 %v1781, %v1900
        %v1902 = vpop.f32.mrb[0].mxu0
        %v1903 = vadd.f32 %v1783, %v1902
        %v1904 = vpop.f32.mrb[0].mxu0
        %v1905 = vadd.f32 %v1785, %v1904
        %v1906 = vpop.f32.mrb[0].mxu0
        %v1907 = vadd.f32 %v1787, %v1906
        %1908 = vmatprep.mubr.bf16.mxu0 %v1065
        %1909 = vmatmul.mubr.bf16.gmra.mrb[0].mxu0 %v1064
        %v1910 = vpop.f32.mrb[0].mxu0
        %v1911 = vadd.f32 %v1791, %v1910
        %v1912 = vpop.f32.mrb[0].mxu0
        %v1913 = vadd.f32 %v1793, %v1912
        %v1914 = vpop.f32.mrb[0].mxu0
        %v1915 = vadd.f32 %v1795, %v1914
        %v1916 = vpop.f32.mrb[0].mxu0
        %v1917 = vadd.f32 %v1797, %v1916
        %1918 = vmatprep.mubr.bf16.mxu0 %v1069
        %1919 = vmatmul.mubr.bf16.gmra.mrb[0].mxu0 %v1068
        %v1920 = vpop.f32.mrb[0].mxu0
        %v1921 = vadd.f32 %v1801, %v1920
        %v1922 = vpop.f32.mrb[0].mxu0
        %v1923 = vadd.f32 %v1803, %v1922
        %v1924 = vpop.f32.mrb[0].mxu0
        %v1925 = vadd.f32 %v1805, %v1924
        %v1926 = vpop.f32.mrb[0].mxu0
        %v1927 = vadd.f32 %v1807, %v1926
        %1928 = vmatprep.mubr.bf16.mxu0 %v1073
        %1929 = vmatmul.mubr.bf16.gmra.mrb[0].mxu0 %v1072
        %v1930 = vpop.f32.mrb[0].mxu0
        %v1931 = vadd.f32 %v1811, %v1930
        %v1932 = vpop.f32.mrb[0].mxu0
        %v1933 = vadd.f32 %v1813, %v1932
        %v1934 = vpop.f32.mrb[0].mxu0
        %v1935 = vadd.f32 %v1815, %v1934
        %v1936 = vpop.f32.mrb[0].mxu0
        %v1937 = vadd.f32 %v1817, %v1936
        %1938 = vmatprep.mubr.bf16.mxu0 %v1077
        %1939 = vmatmul.mubr.bf16.gmra.mrb[0].mxu0 %v1076
        %v1940 = vpop.f32.mrb[0].mxu0
        %v1941 = vadd.f32 %v1821, %v1940
        %v1942 = vpop.f32.mrb[0].mxu0
        %v1943 = vadd.f32 %v1823, %v1942
        %v1944 = vpop.f32.mrb[0].mxu0
        %v1945 = vadd.f32 %v1825, %v1944
        %v1946 = vpop.f32.mrb[0].mxu0
        %v1947 = vadd.f32 %v1827, %v1946
        %1948 = vmatprep.mubr.bf16.mxu0 %v1081
        %1949 = vmatmul.mubr.bf16.gmra.mrb[0].mxu0 %v1080
        %v1950 = vpop.f32.mrb[0].mxu0
        %v1951 = vadd.f32 %v1831, %v1950
        %v1952 = vpop.f32.mrb[0].mxu0
        %v1953 = vadd.f32 %v1833, %v1952
        %v1954 = vpop.f32.mrb[0].mxu0
        %v1955 = vadd.f32 %v1835, %v1954
        %v1956 = vpop.f32.mrb[0].mxu0
        %v1957 = vadd.f32 %v1837, %v1956
        %1958 = vmatprep.mubr.bf16.mxu0 %v1085
        %1959 = vmatmul.mubr.bf16.gmra.mrb[0].mxu0 %v1084
        %v1960 = vpop.f32.mrb[0].mxu0
        %v1961 = vpop.f32.mrb[0].mxu0
        %v1962 = vadd.f32 %v1842, %v1961
        %v1963 = vpop.f32.mrb[0].mxu0
        %v1964 = vpop.f32.mrb[0].mxu0
        %1965 = vdwg.mxu0
        %1966 = vmatprep.subr.bf16.mxu0 0
        %1967 = vmatpush1.bf16.msra.mxu0 %v1536
        %1968 = vmatprep.subr.bf16.mxu0 0
        %1969 = vmatpush1.bf16.msra.mxu0 %v1539
        %1970 = vmatprep.subr.bf16.mxu0 0
        %1971 = vmatpush1.bf16.msra.mxu0 %v1542
        %1972 = vmatprep.subr.bf16.mxu0 0
        %1973 = vmatpush1.bf16.msra.mxu0 %v1545
        %1974 = vmatprep.subr.bf16.mxu0 0
        %1975 = vmatpush1.bf16.msra.mxu0 %v1548
        %1976 = vmatprep.subr.bf16.mxu0 0
        %1977 = vmatpush1.bf16.msra.mxu0 %v1551
        %1978 = vmatprep.subr.bf16.mxu0 0
        %1979 = vmatpush1.bf16.msra.mxu0 %v1554
        %1980 = vmatprep.subr.bf16.mxu0 0
        %1981 = vmatpush1.bf16.msra.mxu0 %v1557
        %1982 = vmatprep.subr.bf16.mxu0 0
        %1983 = vmatpush1.bf16.msra.mxu0 %v1560
        %1984 = vmatprep.subr.bf16.mxu0 0
        %1985 = vmatpush1.bf16.msra.mxu0 %v1563
        %1986 = vmatprep.subr.bf16.mxu0 0
        %1987 = vmatpush1.bf16.msra.mxu0 %v1566
        %1988 = vmatprep.subr.bf16.mxu0 0
        %1989 = vmatpush1.bf16.msra.mxu0 %v1569
        %1990 = vmatprep.subr.bf16.mxu0 0
        %1991 = vmatpush1.bf16.msra.mxu0 %v1572
        %1992 = vmatprep.subr.bf16.mxu0 0
        %1993 = vmatpush1.bf16.msra.mxu0 %v1575
        %1994 = vmatprep.subr.bf16.mxu0 0
        %1995 = vmatpush1.bf16.msra.mxu0 %v1578
        %1996 = vmatprep.subr.bf16.mxu0 0
        %1997 = vmatpush1.bf16.msra.mxu0 %v1581
        %1998 = vmatprep.mubr.bf16.mxu0 %v1051
        %1999 = vmatmul.mubr.bf16.gmra.mrb[0].mxu0 %v1050
        %v2000 = vpop.f32.mrb[0].mxu0
        %v2001 = vadd.f32 0.0, %v2000
        %v2002 = vpop.f32.mrb[0].mxu0
        %v2003 = vpop.f32.mrb[0].mxu0
        %v2004 = vadd.f32 0.0, %v2003
        %v2005 = vpop.f32.mrb[0].mxu0
        %2006 = vmatprep.mubr.bf16.mxu0 %v1055
        %2007 = vmatmul.mubr.bf16.gmra.mrb[0].mxu0 %v1054
        %v2008 = vpop.f32.mrb[0].mxu0
        %v2009 = vadd.f32 0.0, %v2008
        %v2010 = vpop.f32.mrb[0].mxu0
        %v2011 = vpop.f32.mrb[0].mxu0
        %v2012 = vadd.f32 0.0, %v2011
        %v2013 = vpop.f32.mrb[0].mxu0
        %2014 = vmatprep.mubr.bf16.mxu0 %v1059
        %2015 = vmatmul.mubr.bf16.gmra.mrb[0].mxu0 %v1058
        %v2016 = vpop.f32.mrb[0].mxu0
        %v2017 = vadd.f32 0.0, %v2016
        %v2018 = vpop.f32.mrb[0].mxu0
        %v2019 = vpop.f32.mrb[0].mxu0
        %v2020 = vadd.f32 0.0, %v2019
        %v2021 = vpop.f32.mrb[0].mxu0
        %2022 = vmatprep.mubr.bf16.mxu0 %v1063
        %2023 = vmatmul.mubr.bf16.gmra.mrb[0].mxu0 %v1062
        %v2024 = vpop.f32.mrb[0].mxu0
        %v2025 = vadd.f32 0.0, %v2024
        %v2026 = vpop.f32.mrb[0].mxu0
        %v2027 = vpop.f32.mrb[0].mxu0
        %v2028 = vadd.f32 0.0, %v2027
        %v2029 = vpop.f32.mrb[0].mxu0
        %2030 = vmatprep.mubr.bf16.mxu0 %v1067
        %2031 = vmatmul.mubr.bf16.gmra.mrb[0].mxu0 %v1066
        %v2032 = vpop.f32.mrb[0].mxu0
        %v2033 = vadd.f32 0.0, %v2032
        %v2034 = vpop.f32.mrb[0].mxu0
        %v2035 = vpop.f32.mrb[0].mxu0
        %v2036 = vadd.f32 0.0, %v2035
        %v2037 = vpop.f32.mrb[0].mxu0
        %2038 = vmatprep.mubr.bf16.mxu0 %v1071
        %2039 = vmatmul.mubr.bf16.gmra.mrb[0].mxu0 %v1070
        %v2040 = vpop.f32.mrb[0].mxu0
        %v2041 = vadd.f32 0.0, %v2040
        %v2042 = vpop.f32.mrb[0].mxu0
        %v2043 = vpop.f32.mrb[0].mxu0
        %v2044 = vadd.f32 0.0, %v2043
        %v2045 = vpop.f32.mrb[0].mxu0
        %2046 = vmatprep.mubr.bf16.mxu0 %v1075
        %2047 = vmatmul.mubr.bf16.gmra.mrb[0].mxu0 %v1074
        %v2048 = vpop.f32.mrb[0].mxu0
        %v2049 = vadd.f32 0.0, %v2048
        %v2050 = vpop.f32.mrb[0].mxu0
        %v2051 = vpop.f32.mrb[0].mxu0
        %v2052 = vadd.f32 0.0, %v2051
        %v2053 = vpop.f32.mrb[0].mxu0
        %2054 = vmatprep.mubr.bf16.mxu0 %v1079
        %2055 = vmatmul.mubr.bf16.gmra.mrb[0].mxu0 %v1078
        %v2056 = vpop.f32.mrb[0].mxu0
        %v2057 = vadd.f32 0.0, %v2056
        %v2058 = vpop.f32.mrb[0].mxu0
        %v2059 = vpop.f32.mrb[0].mxu0
        %v2060 = vadd.f32 0.0, %v2059
        %v2061 = vpop.f32.mrb[0].mxu0
        %2062 = vmatprep.mubr.bf16.mxu0 %v1083
        %2063 = vmatmul.mubr.bf16.gmra.mrb[0].mxu0 %v1082
        %v2064 = vpop.f32.mrb[0].mxu0
        %v2065 = vadd.f32 0.0, %v2064
        %v2066 = vpop.f32.mrb[0].mxu0
        %v2067 = vpop.f32.mrb[0].mxu0
        %v2068 = vpop.f32.mrb[0].mxu0
        %2069 = vdwg.mxu0
        %2070 = vmatprep.subr.bf16.mxu0 0
        %2071 = vmatpush1.bf16.msra.mxu0 %v1584
        %2072 = vmatprep.subr.bf16.mxu0 0
        %2073 = vmatpush1.bf16.msra.mxu0 %v1587
        %2074 = vmatprep.subr.bf16.mxu0 0
        %2075 = vmatpush1.bf16.msra.mxu0 %v1590
        %2076 = vmatprep.subr.bf16.mxu0 0
        %2077 = vmatpush1.bf16.msra.mxu0 %v1593
        %2078 = vmatprep.subr.bf16.mxu0 0
        %2079 = vmatpush1.bf16.msra.mxu0 %v1596
        %2080 = vmatprep.subr.bf16.mxu0 0
        %2081 = vmatpush1.bf16.msra.mxu0 %v1599
        %2082 = vmatprep.subr.bf16.mxu0 0
        %2083 = vmatpush1.bf16.msra.mxu0 %v1602
        %2084 = vmatprep.subr.bf16.mxu0 0
        %2085 = vmatpush1.bf16.msra.mxu0 %v1605
        %2086 = vmatprep.subr.bf16.mxu0 0
        %2087 = vmatpush1.bf16.msra.mxu0 %v1608
        %2088 = vmatprep.subr.bf16.mxu0 0
        %2089 = vmatpush1.bf16.msra.mxu0 %v1611
        %2090 = vmatprep.subr.bf16.mxu0 0
        %2091 = vmatpush1.bf16.msra.mxu0 %v1614
        %2092 = vmatprep.subr.bf16.mxu0 0
        %2093 = vmatpush1.bf16.msra.mxu0 %v1617
        %2094 = vmatprep.subr.bf16.mxu0 0
        %2095 = vmatpush1.bf16.msra.mxu0 %v1620
        %2096 = vmatprep.subr.bf16.mxu0 0
        %2097 = vmatpush1.bf16.msra.mxu0 %v1623
        %2098 = vmatprep.subr.bf16.mxu0 0
        %2099 = vmatpush1.bf16.msra.mxu0 %v1626
        %2100 = vmatprep.subr.bf16.mxu0 0
        %2101 = vmatpush1.bf16.msra.mxu0 %v1629
        %2102 = vmatprep.mubr.bf16.mxu0 %v1053
        %2103 = vmatmul.mubr.bf16.gmra.mrb[0].mxu0 %v1052
        %v2104 = vpop.f32.mrb[0].mxu0
        %v2105 = vadd.f32 %v2001, %v2104
        %v2106 = vpop.f32.mrb[0].mxu0
        %v2107 = vpop.f32.mrb[0].mxu0
        %v2108 = vadd.f32 %v2004, %v2107
        %v2109 = vpop.f32.mrb[0].mxu0
        %2110 = vmatprep.mubr.bf16.mxu0 %v1057
        %2111 = vmatmul.mubr.bf16.gmra.mrb[0].mxu0 %v1056
        %v2112 = vpop.f32.mrb[0].mxu0
        %v2113 = vadd.f32 %v2009, %v2112
        %v2114 = vpop.f32.mrb[0].mxu0
        %v2115 = vpop.f32.mrb[0].mxu0
        %v2116 = vadd.f32 %v2012, %v2115
        %v2117 = vpop.f32.mrb[0].mxu0
        %2118 = vmatprep.mubr.bf16.mxu0 %v1061
        %2119 = vmatmul.mubr.bf16.gmra.mrb[0].mxu0 %v1060
        %v2120 = vpop.f32.mrb[0].mxu0
        %v2121 = vadd.f32 %v2017, %v2120
        %v2122 = vpop.f32.mrb[0].mxu0
        %v2123 = vpop.f32.mrb[0].mxu0
        %v2124 = vadd.f32 %v2020, %v2123
        %v2125 = vpop.f32.mrb[0].mxu0
        %2126 = vmatprep.mubr.bf16.mxu0 %v1065
        %2127 = vmatmul.mubr.bf16.gmra.mrb[0].mxu0 %v1064
        %v2128 = vpop.f32.mrb[0].mxu0
        %v2129 = vadd.f32 %v2025, %v2128
        %v2130 = vpop.f32.mrb[0].mxu0
        %v2131 = vpop.f32.mrb[0].mxu0
        %v2132 = vadd.f32 %v2028, %v2131
        %v2133 = vpop.f32.mrb[0].mxu0
        %2134 = vmatprep.mubr.bf16.mxu0 %v1069
        %2135 = vmatmul.mubr.bf16.gmra.mrb[0].mxu0 %v1068
        %v2136 = vpop.f32.mrb[0].mxu0
        %v2137 = vadd.f32 %v2033, %v2136
        %v2138 = vpop.f32.mrb[0].mxu0
        %v2139 = vpop.f32.mrb[0].mxu0
        %v2140 = vadd.f32 %v2036, %v2139
        %v2141 = vpop.f32.mrb[0].mxu0
        %2142 = vmatprep.mubr.bf16.mxu0 %v1073
        %2143 = vmatmul.mubr.bf16.gmra.mrb[0].mxu0 %v1072
        %v2144 = vpop.f32.mrb[0].mxu0
        %v2145 = vadd.f32 %v2041, %v2144
        %v2146 = vpop.f32.mrb[0].mxu0
        %v2147 = vpop.f32.mrb[0].mxu0
        %v2148 = vadd.f32 %v2044, %v2147
        %v2149 = vpop.f32.mrb[0].mxu0
        %2150 = vmatprep.mubr.bf16.mxu0 %v1077
        %2151 = vmatmul.mubr.bf16.gmra.mrb[0].mxu0 %v1076
        %v2152 = vpop.f32.mrb[0].mxu0
        %v2153 = vadd.f32 %v2049, %v2152
        %v2154 = vpop.f32.mrb[0].mxu0
        %v2155 = vpop.f32.mrb[0].mxu0
        %v2156 = vadd.f32 %v2052, %v2155
        %v2157 = vpop.f32.mrb[0].mxu0
        %2158 = vmatprep.mubr.bf16.mxu0 %v1081
        %2159 = vmatmul.mubr.bf16.gmra.mrb[0].mxu0 %v1080
        %v2160 = vpop.f32.mrb[0].mxu0
        %v2161 = vadd.f32 %v2057, %v2160
        %v2162 = vpop.f32.mrb[0].mxu0
        %v2163 = vpop.f32.mrb[0].mxu0
        %v2164 = vadd.f32 %v2060, %v2163
        %v2165 = vpop.f32.mrb[0].mxu0
        %2166 = vmatprep.mubr.bf16.mxu0 %v1085
        %2167 = vmatmul.mubr.bf16.gmra.mrb[0].mxu0 %v1084
        %v2168 = vpop.f32.mrb[0].mxu0
        %v2169 = vadd.f32 %v2065, %v2168
        %v2170 = vpop.f32.mrb[0].mxu0
        %v2171 = vpop.f32.mrb[0].mxu0
        %v2172 = vpop.f32.mrb[0].mxu0
        %2173 = vdwg.mxu0
        %vm2191 = vcmask 1046528
        %v2192 = vrot.slane %v1883, 1
        %v2193 = vrot.slane %v1887, 1
        %v2194 = vsel %vm2191, %v2192, %v2193
        %v2195 = vrot.slane %v1893, 1
        %v2196 = vsel %vm2191, %v2193, %v2195
        %v2197 = vrot.slane %v1897, 1
        %v2198 = vsel %vm2191, %v2195, %v2197
        %v2199 = vrot.slane %v1903, 1
        %v2200 = vsel %vm2191, %v2197, %v2199
        %v2201 = vrot.slane %v1907, 1
        %v2202 = vsel %vm2191, %v2199, %v2201
        %v2203 = vrot.slane %v1913, 1
        %v2204 = vsel %vm2191, %v2201, %v2203
        %v2205 = vrot.slane %v1917, 1
        %v2206 = vsel %vm2191, %v2203, %v2205
        %v2207 = vrot.slane %v1923, 1
        %v2208 = vsel %vm2191, %v2205, %v2207
        %v2209 = vrot.slane %v1927, 1
        %v2210 = vsel %vm2191, %v2207, %v2209
        %v2211 = vrot.slane %v1933, 1
        %v2212 = vsel %vm2191, %v2209, %v2211
        %v2213 = vrot.slane %v1937, 1
        %v2214 = vsel %vm2191, %v2211, %v2213
        %v2215 = vrot.slane %v1943, 1
        %v2216 = vsel %vm2191, %v2213, %v2215
        %v2217 = vrot.slane %v1947, 1
        %v2218 = vsel %vm2191, %v2215, %v2217
        %v2219 = vrot.slane %v1953, 1
        %v2220 = vsel %vm2191, %v2217, %v2219
        %v2221 = vrot.slane %v1957, 1
        %v2222 = vsel %vm2191, %v2219, %v2221
        %v2223 = vrot.slane %v1962, 1
        %v2224 = vsel %vm2191, %v2221, %v2223
        %v2241 = vadd.f32 %v1881, %v2194
        %v2242 = vadd.f32 %v1885, %v2196
        %v2243 = vadd.f32 %v1891, %v2198
        %v2244 = vadd.f32 %v1895, %v2200
        %v2245 = vadd.f32 %v1901, %v2202
        %v2246 = vadd.f32 %v1905, %v2204
        %v2247 = vadd.f32 %v1911, %v2206
        %v2248 = vadd.f32 %v1915, %v2208
        %v2249 = vadd.f32 %v1921, %v2210
        %v2250 = vadd.f32 %v1925, %v2212
        %v2251 = vadd.f32 %v1931, %v2214
        %v2252 = vadd.f32 %v1935, %v2216
        %v2253 = vadd.f32 %v1941, %v2218
        %v2254 = vadd.f32 %v1945, %v2220
        %v2255 = vadd.f32 %v1951, %v2222
        %v2256 = vadd.f32 %v1955, %v2224
        %v2274 = vrot.slane %v2105, 2
        %v2275 = vrot.slane %v2108, 2
        %v2276 = vsel %vm499, %v2274, %v2275
        %v2277 = vrot.slane %v2113, 2
        %v2278 = vsel %vm499, %v2275, %v2277
        %v2279 = vrot.slane %v2116, 2
        %v2280 = vsel %vm499, %v2277, %v2279
        %v2281 = vrot.slane %v2121, 2
        %v2282 = vsel %vm499, %v2279, %v2281
        %v2283 = vrot.slane %v2124, 2
        %v2284 = vsel %vm499, %v2281, %v2283
        %v2285 = vrot.slane %v2129, 2
        %v2286 = vsel %vm499, %v2283, %v2285
        %v2287 = vrot.slane %v2132, 2
        %v2288 = vsel %vm499, %v2285, %v2287
        %v2289 = vrot.slane %v2137, 2
        %v2290 = vsel %vm499, %v2287, %v2289
        %v2291 = vrot.slane %v2140, 2
        %v2292 = vsel %vm499, %v2289, %v2291
        %v2293 = vrot.slane %v2145, 2
        %v2294 = vsel %vm499, %v2291, %v2293
        %v2295 = vrot.slane %v2148, 2
        %v2296 = vsel %vm499, %v2293, %v2295
        %v2297 = vrot.slane %v2153, 2
        %v2298 = vsel %vm499, %v2295, %v2297
        %v2299 = vrot.slane %v2156, 2
        %v2300 = vsel %vm499, %v2297, %v2299
        %v2301 = vrot.slane %v2161, 2
        %v2302 = vsel %vm499, %v2299, %v2301
        %v2303 = vrot.slane %v2164, 2
        %v2304 = vsel %vm499, %v2301, %v2303
        %v2305 = vrot.slane %v2169, 2
        %v2306 = vsel %vm499, %v2303, %v2305
        %v2323 = vadd.f32 %v2241, %v2276
        %v2324 = vadd.f32 %v2242, %v2278
        %v2325 = vadd.f32 %v2243, %v2280
        %v2326 = vadd.f32 %v2244, %v2282
        %v2327 = vadd.f32 %v2245, %v2284
        %v2328 = vadd.f32 %v2246, %v2286
        %v2329 = vadd.f32 %v2247, %v2288
        %v2330 = vadd.f32 %v2248, %v2290
        %v2331 = vadd.f32 %v2249, %v2292
        %v2332 = vadd.f32 %v2250, %v2294
        %v2333 = vadd.f32 %v2251, %v2296
        %v2334 = vadd.f32 %v2252, %v2298
        %v2335 = vadd.f32 %v2253, %v2300
        %v2336 = vadd.f32 %v2254, %v2302
        %v2337 = vadd.f32 %v2255, %v2304
        %v2338 = vadd.f32 %v2256, %v2306
        %v2339 = vld [vmem:[%s4] sm:$0x1]
        %v2341 = vlaneseq
        %v2342 = vshrl.u32 %v2341, 7
        %v2343 = vsub.s32 0, %v2342
        %v2344 = vrot.slane %v2339, %v2343
        %v2346 = vadd.f32 %v2323, %v2344
        %v2347 = vadd.f32 %v2324, %v2344
        %v2348 = vadd.f32 %v2325, %v2344
        %v2349 = vadd.f32 %v2326, %v2344
        %v2350 = vadd.f32 %v2327, %v2344
        %v2351 = vadd.f32 %v2328, %v2344
        %v2352 = vadd.f32 %v2329, %v2344
        %v2353 = vadd.f32 %v2330, %v2344
        %v2354 = vadd.f32 %v2331, %v2344
        %v2355 = vadd.f32 %v2332, %v2344
        %v2356 = vadd.f32 %v2333, %v2344
        %v2357 = vadd.f32 %v2334, %v2344
        %v2358 = vadd.f32 %v2335, %v2344
        %v2359 = vadd.f32 %v2336, %v2344
        %v2360 = vadd.f32 %v2337, %v2344
        %v2361 = vadd.f32 %v2338, %v2344
        %v2362 = vmax.f32 %v2346, 0.0
        %v2363 = vmax.f32 %v2347, 0.0
        %v2364 = vmax.f32 %v2348, 0.0
        %v2365 = vmax.f32 %v2349, 0.0
        %v2366 = vmax.f32 %v2350, 0.0
        %v2367 = vmax.f32 %v2351, 0.0
        %v2368 = vmax.f32 %v2352, 0.0
        %v2369 = vmax.f32 %v2353, 0.0
        %v2370 = vmax.f32 %v2354, 0.0
        %v2371 = vmax.f32 %v2355, 0.0
        %v2372 = vmax.f32 %v2356, 0.0
        %v2373 = vmax.f32 %v2357, 0.0
        %v2374 = vmax.f32 %v2358, 0.0
        %v2375 = vmax.f32 %v2359, 0.0
        %v2376 = vmax.f32 %v2360, 0.0
        %v2377 = vmax.f32 %v2361, 0.0
        %2378 = vxpose.xlu0.b32.start [1/16] %v2362, 128
        %2379 = vxpose.xlu0.b32.cont [2/16] %v2363, 128
        %2380 = vxpose.xlu0.b32.cont [3/16] %v2364, 128
        %2381 = vxpose.xlu0.b32.cont [4/16] %v2365, 128
        %2382 = vxpose.xlu0.b32.cont [5/16] %v2366, 128
        %2383 = vxpose.xlu0.b32.cont [6/16] %v2367, 128
        %2384 = vxpose.xlu0.b32.cont [7/16] %v2368, 128
        %2385 = vxpose.xlu0.b32.cont [8/16] %v2369, 128
        %2386 = vxpose.xlu0.b32.cont [9/16] %v2370, 128
        %2387 = vxpose.xlu0.b32.cont [10/16] %v2371, 128
        %2388 = vxpose.xlu0.b32.cont [11/16] %v2372, 128
        %2389 = vxpose.xlu0.b32.cont [12/16] %v2373, 128
        %2390 = vxpose.xlu0.b32.cont [13/16] %v2374, 128
        %2391 = vxpose.xlu0.b32.cont [14/16] %v2375, 128
        %2392 = vxpose.xlu0.b32.cont [15/16] %v2376, 128
        %2393 = vxpose.xlu0.b32.end [16/16] %v2377, 128
        %v2394 = vpop.trf.xlu0
        %v2395 = vpop.trf.xlu0
        %v2396 = vpop.trf.xlu0
        %v2397 = vpop.trf.xlu0
        %v2398 = vpop.trf.xlu0
        %v2399 = vpop.trf.xlu0
        %v2400 = vpop.trf.xlu0
        %v2401 = vpop.trf.xlu0
        %v2402 = vpop.trf.xlu0
        %v2403 = vpop.trf.xlu0
        %v2404 = vpop.trf.xlu0
        %v2405 = vpop.trf.xlu0
        %v2406 = vpop.trf.xlu0
        %v2407 = vpop.trf.xlu0
        %v2408 = vpop.trf.xlu0
        %v2409 = vpop.trf.xlu0
        %2410 = vst [vmem:[%s340] sm:$0xff] %v2394
        %2411 = vst [vmem:[%s340 + $0x8] sm:$0xff] %v2395
        %2412 = vst [vmem:[%s340 + $0x10] sm:$0xff] %v2396
        %2413 = vst [vmem:[%s340 + $0x18] sm:$0xff] %v2397
        %2414 = vst [vmem:[%s340 + $0x20] sm:$0xff] %v2398
        %2415 = vst [vmem:[%s340 + $0x28] sm:$0xff] %v2399
        %2416 = vst [vmem:[%s340 + $0x30] sm:$0xff] %v2400
        %2417 = vst [vmem:[%s340 + $0x38] sm:$0xff] %v2401
        %2418 = vst [vmem:[%s340 + $0x40] sm:$0xff] %v2402
        %2419 = vst [vmem:[%s340 + $0x48] sm:$0xff] %v2403
        %2420 = vst [vmem:[%s340 + $0x50] sm:$0xff] %v2404
        %2421 = vst [vmem:[%s340 + $0x58] sm:$0xff] %v2405
        %2422 = vst [vmem:[%s340 + $0x60] sm:$0xff] %v2406
        %2423 = vst [vmem:[%s340 + $0x68] sm:$0xff] %v2407
        %2424 = vst [vmem:[%s340 + $0x70] sm:$0xff] %v2408
        %2425 = vst [vmem:[%s340 + $0x78] sm:$0xff] %v2409
        %v2426 = vld [vmem:[%s5] sm:$0x3]
        %v2427 = vpack.c.bf16 %v2395, %v2394
        %v2428 = vpack.c.bf16 %v2397, %v2396
        %v2429 = vpack.c.bf16 %v2399, %v2398
        %v2430 = vpack.c.bf16 %v2401, %v2400
        %v2431 = vpack.c.bf16 %v2403, %v2402
        %v2432 = vpack.c.bf16 %v2405, %v2404
        %v2433 = vpack.c.bf16 %v2407, %v2406
        %v2434 = vpack.c.bf16 %v2409, %v2408
        %v2435 = vld [vmem:[%s6] sm:$0x7]
        %2437 = vset.pattern.permute.xlu0 0
        %2438 = vperm.xlu0 %2437, %v2435
        %v2439 = vpop.permute.xlu0 %2438
        %2441 = vmatprep.subr.bf16.mxu0 0
        %2442 = vmatpush1.bf16.msra.mxu0 %v2427
        %2443 = vmatprep.subr.bf16.mxu0 0
        %2444 = vmatpush1.bf16.msra.mxu0 %v2428
        %2445 = vmatprep.subr.bf16.mxu0 0
        %2446 = vmatpush1.bf16.msra.mxu0 %v2429
        %2447 = vmatprep.subr.bf16.mxu0 0
        %2448 = vmatpush1.bf16.msra.mxu0 %v2430
        %2449 = vmatprep.subr.bf16.mxu0 0
        %2450 = vmatpush1.bf16.msra.mxu0 %v2431
        %2451 = vmatprep.subr.bf16.mxu0 0
        %2452 = vmatpush1.bf16.msra.mxu0 %v2432
        %2453 = vmatprep.subr.bf16.mxu0 0
        %2454 = vmatpush1.bf16.msra.mxu0 %v2433
        %2455 = vmatprep.subr.bf16.mxu0 0
        %2456 = vmatpush1.bf16.msra.mxu0 %v2434
        %2457 = vmatprep.subr.bf16.mxu0 0
        %2458 = vmatpush1.bf16.msra.mxu0 0
        %2459 = vmatprep.subr.bf16.mxu0 0
        %2460 = vmatpush1.bf16.msra.mxu0 0
        %2461 = vmatprep.subr.bf16.mxu0 0
        %2462 = vmatpush1.bf16.msra.mxu0 0
        %2463 = vmatprep.subr.bf16.mxu0 0
        %2464 = vmatpush1.bf16.msra.mxu0 0
        %2465 = vmatprep.subr.bf16.mxu0 0
        %2466 = vmatpush1.bf16.msra.mxu0 0
        %2467 = vmatprep.subr.bf16.mxu0 0
        %2468 = vmatpush1.bf16.msra.mxu0 0
        %2469 = vmatprep.subr.bf16.mxu0 0
        %2470 = vmatpush1.bf16.msra.mxu0 0
        %2471 = vmatprep.subr.bf16.mxu0 0
        %2472 = vmatpush1.bf16.msra.mxu0 0
        %2473 = vmatprep.mubr.bf16.mxu0 0
        %2474 = vmatmul.mubr.bf16.gmra.mrb[0].mxu0 %v2426
        %v2475 = vpop.f32.mrb[0].mxu0
        %v2476 = vadd.f32 %v2439, %v2475
        %v2477 = vpop.f32.mrb[0].mxu0
        %v2478 = vpop.f32.mrb[0].mxu0
        %v2479 = vpop.f32.mrb[0].mxu0
        %2480 = vdwg.mxu0
        %v2481 = vmul.f32 %v2476, 0.01
        %v2482 = vxor.u32 %v2481, 2147483648
        %v2483 = vmul.f32 %v2482, 1.442695
        %v2484 = vpow.pop %v2483
        %v2485 = vadd.f32 %v2484, 1.0
        %v2486 = vrcp.pop %v2485
        %v2487 = vmul.f32 1.0, %v2486
        %2488 = vst [vmem:[%s365] sm:$0x7] %v2487
        %s2489 = sand.u32 %s200, 1
        %s2490 = scalar_lea.sflag [#allocation4], %s2489
        %s2491 = sand.u32 %s200, 1
        %s2492 = smul.addr %s2491, 128
        %s2493 = scalar_lea.vmem [#allocation5], %s2492
        %p2494 = scmp.lt.s32.totalorder %s28, 1
        %s2495 = scalar_select %p2494, %s28, 1
        %p2496 = scmp.lt.s32.totalorder %s29, 0
        %s2497 = scalar_select %p2496, %s29, 0
        %s2498 = sadd.s32 %s2497, %s2495
        %s2499 = smul.addr %s2498, 4
        %s2500 = scalar_lea.vmem %s8, %s2499
        // Predicated region
        $region53: #{tpu_custom_call.1} parent=47 // pred_check
          %p2501 = pneg %p210
        $region54: #{tpu_custom_call.1} parent=47 // pred_check_branch
          %2503 = sbr.rel (%p2501) target = $region56
        $region55: #{tpu_custom_call.1} parent=47 // pred_region
          %s2505 = ssub.s32 2048, 2048
          %2506 = vsyncadd %s2490, %s2505
          %s2507 = smul.addr %s28, 16
          %s2508 = sadd.s32 %s29, %s2507
          %s2509 = smul.addr %s2508, 128
          %s2510 = scalar_lea.hbm %s7, %s2509
          %s2511 = sshll.u32 %s2493, 4
          %s2512 = int_to_ptr.vmem [resolvable:$true] %s2511
          %2517 = dma.vmem_to_hbm [thread:$0]  %s2512, 2048, %s2510, %s2490, 128, 128, 8
        $region56: #{tpu_custom_call.1} parent=47 // pred_fallthru
          _
        // Predicated region
        $region57: #{tpu_custom_call.1} parent=47 // pred_check
          %p2518 = pneg %p238
        $region58: #{tpu_custom_call.1} parent=47 // pred_check_branch
          %2520 = sbr.rel (%p2518) target = $region60
        $region59: #{tpu_custom_call.1} parent=47 // pred_region
          _
        $region60: #{tpu_custom_call.1} parent=47 // pred_fallthru
          _
      $region48: #{tpu_custom_call.1} parent=5 // pred_fallthru
        _
      %p2521 = scmp.le.s32.totalorder 2, %s19
      // Predicated region
      $region61: #{tpu_custom_call.1} parent=5 // pred_check
        %p2522 = pneg %p2521
      $region62: #{tpu_custom_call.1} parent=5 // pred_check_branch
        %2524 = sbr.rel (%p2522) target = $region64
      $region63: #{tpu_custom_call.1} parent=5 // pred_region
        %s2525 = ssub.s32 %s19, 2
        // Predicated region
        $region65: #{tpu_custom_call.1} parent=63 // pred_check
          %p2526 = pneg %p216
        $region66: #{tpu_custom_call.1} parent=63 // pred_check_branch
          %2528 = sbr.rel (%p2526) target = $region68
        $region67: #{tpu_custom_call.1} parent=63 // pred_region
          %s2529 = sand.u32 %s201, 1
          %s2530 = scalar_lea.sflag [#allocation4], %s2529
          %s2531 = sand.u32 %s201, 1
          %s2532 = smul.addr %s2531, 128
          %s2533 = scalar_lea.vmem [#allocation5], %s2532
          %2534 = dma.done %s2530, 2048
        $region68: #{tpu_custom_call.1} parent=63 // pred_fallthru
          _
        // Predicated region
        $region69: #{tpu_custom_call.1} parent=63 // pred_check
          %p2535 = pneg %p244
        $region70: #{tpu_custom_call.1} parent=63 // pred_check_branch
          %2537 = sbr.rel (%p2535) target = $region72
        $region71: #{tpu_custom_call.1} parent=63 // pred_region
          %p2538 = scmp.lt.s32.totalorder %s30, 1
          %s2539 = scalar_select %p2538, %s30, 1
          %p2540 = scmp.lt.s32.totalorder %s31, 0
          %s2541 = scalar_select %p2540, %s31, 0
          %s2542 = sadd.s32 %s2541, %s2539
          %s2543 = smul.addr %s2542, 4
          %s2544 = scalar_lea.vmem %s8, %s2543
        $region72: #{tpu_custom_call.1} parent=63 // pred_fallthru
          _
      $region64: #{tpu_custom_call.1} parent=5 // pred_fallthru
        _
    $region6: #{tpu_custom_call.1} parent=1 // loop_footer
      %s23 = sadd.s32 1, %s19
    $region7: #{tpu_custom_call.1} parent=1 // loop_footer_branch
      %18 = sbr.rel target = $region3
    $region8: #{tpu_custom_call.1} parent=1 // loop_exit
      _
    %2545 = vsyncpa [#allocation3], 1
    %s2546 = scalar_lea.sflag [#allocation3], 1
    %2547 = vsyncpa %s2546, 1
    %2548 = vsyncpa [#allocation4], 1
    %s2549 = scalar_lea.sflag [#allocation4], 1
    %2550 = vsyncpa %s2549, 1

</llo_original>
